<compile_context>
chip_gen: v6e
topology: v6e:2x2x1
jax: 0.10.0
libtpu: 0.0.40
codegen_flags: <defaults>
</compile_context>

<pallas_src>
import jax
import jax.numpy as jnp
from jax import lax
from jax.experimental import pallas as pl
from jax.experimental.pallas import tpu as pltpu


def _head_kernel(cls_ref, wp_ref, bp_ref, wd_ref, bd_ref, score_ref, cat_ref):
    # cls_ref:   [GB, N, H]  CLS embeddings for GB groups, f32
    # wp_ref:    [H, H]      projection weight (PyTorch (out, in) layout), bf16
    # bp_ref:    [1, H]      projection bias, f32
    # wd_ref:    [1, 2H]     dense weight (PyTorch layout), f32
    # bd_ref:    [1]         dense bias (SMEM scalar), f32
    # score_ref: [GB, N]     output scores
    # cat_ref:   [GB, N, 2H] output logits_cat
    xg = cls_ref[...]                                   # [GB, N, H] f32
    gb, n, h = xg.shape

    # --- proj = logits @ Wp.T + bp --------------------------------------
    # Stack all GB*N rows so the MXU sees M = GB*N on the only H x H matmul.
    # Contract over H on both sides (no transpose materialized); bf16
    # operands, f32 accumulation. Leading-dim reshape keeps (8,128) tiles
    # intact (layout-preserving).
    x2 = xg.reshape(gb * n, h)
    proj2 = lax.dot_general(
        x2.astype(jnp.bfloat16), wp_ref[...],           # weight pre-cast bf16
        dimension_numbers=(((1,), (1,)), ((), ())),
        preferred_element_type=jnp.float32,
    ) + bp_ref[...]                                     # [GB*N, H] f32
    proj = proj2.reshape(gb, n, h)

    # --- attention logits + softmax (per group, all in f32) -------------
    # Tiny [N,H]x[H,N] per group; keeping it f32 + exact divide preserves the
    # module's score ordering (review correctness concern).
    s = jnp.einsum("gqh,gkh->gqk", proj, xg)            # [GB, N, N] f32
    m = jnp.max(s, axis=2, keepdims=True)
    e = jnp.exp(s - m)
    attn = e / jnp.sum(e, axis=2, keepdims=True)        # exact softmax(dim=1)

    # --- attn_out = attn @ logits (per group, f32) -----------------------
    attn_out = jnp.einsum("gqk,gkh->gqh", attn, xg)     # [GB, N, H] f32

    # --- logits_cat = [logits | attn_out] --------------------------------
    # Direct lane-aligned stores into the [GB, N, 2H] slab (2H multiple of
    # 128 -> unmasked vst), no concatenate temp.
    cat_ref[:, :, :h] = xg
    cat_ref[:, :, h:] = attn_out

    # --- score = logits_cat @ Wd.T + bd ----------------------------------
    # Wd stays in its natural lane-dense [1, 2H] layout: VPU broadcast-mult +
    # XLU lane reduce instead of a [2H, 1] masked-weight matmul.
    wd = wd_ref[...]
    wd_l = wd[:, :h].reshape(1, 1, h)
    wd_r = wd[:, h:].reshape(1, 1, h)
    score_ref[...] = (
        jnp.sum(xg * wd_l, axis=2)
        + jnp.sum(attn_out * wd_r, axis=2)
        + bd_ref[0]
    )


def prepare_proj_weight(w_proj):
    """One-time parameter prep (do this OUTSIDE the per-call hot path): cast the
    H x H projection weight to bf16 so its HBM->VMEM DMA is halved and no
    in-kernel pack/convert is needed."""
    return jnp.asarray(w_proj, dtype=jnp.bfloat16)


def bert_global_cat_head(cls_emb, w_proj_bf16, b_proj, w_dense, b_dense,
                         *, group_block=8):
    """BertGlobalCat 'dev' head over G independent scoring groups.

    cls_emb:     [G, N, H] (or [N, H] for a single group) CLS embeddings, f32
    w_proj_bf16: [H, H]    projection weight, PyTorch (out,in) layout, bf16
                           (use prepare_proj_weight once on the f32 weight)
    b_proj:      [H]       projection bias, f32
    w_dense:     [1, 2H]   dense weight, PyTorch layout, f32
    b_dense:     [1]       dense bias, f32
    Returns (score [G, N], logits_cat [G, N, 2H]); the group dim is squeezed
    if the input had no group dim.
    """
    assert group_block % 8 == 0, "group_block must be a multiple of 8"
    squeeze_group = cls_emb.ndim == 2
    if squeeze_group:
        cls_emb = cls_emb[None]
    g, n, h = cls_emb.shape

    # Block the group axis; pad with zero groups if needed (zeros are safe:
    # uniform softmax over zero logits -> zero attn_out, discarded below).
    gb = min(group_block, g)
    g_pad = pl.cdiv(g, gb) * gb
    if g_pad != g:
        cls_emb = jnp.concatenate(
            [cls_emb, jnp.zeros((g_pad - g, n, h), cls_emb.dtype)], axis=0)

    bp = b_proj.reshape(1, h).astype(jnp.float32)
    wd = w_dense.reshape(1, 2 * h).astype(jnp.float32)
    bd = b_dense.reshape(1).astype(jnp.float32)

    grid = (g_pad // gb,)
    score, cat = pl.pallas_call(
        _head_kernel,
        grid=grid,
        in_specs=[
            # per-group-block CLS rows
            pl.BlockSpec((gb, n, h), lambda i: (i, 0, 0)),
            # weights/biases resident across the whole grid (DMA'd once)
            pl.BlockSpec((h, h), lambda i: (0, 0)),
            pl.BlockSpec((1, h), lambda i: (0, 0)),
            pl.BlockSpec((1, 2 * h), lambda i: (0, 0)),
            # scalar dense bias in SMEM (no padded (8,128) VMEM tile)
            pl.BlockSpec(memory_space=pltpu.MemorySpace.SMEM),
        ],
        out_specs=(
            pl.BlockSpec((gb, n), lambda i: (i, 0)),
            pl.BlockSpec((gb, n, 2 * h), lambda i: (i, 0, 0)),
        ),
        out_shape=(
            jax.ShapeDtypeStruct((g_pad, n), jnp.float32),
            jax.ShapeDtypeStruct((g_pad, n, 2 * h), jnp.float32),
        ),
        compiler_params=pltpu.CompilerParams(
            dimension_semantics=("parallel",)),   # 2x on v7x megacore
    )(cls_emb, w_proj_bf16, bp, wd, bd)

    score, cat = score[:g], cat[:g]
    if squeeze_group:
        score, cat = score[0], cat[0]
    return score, cat


def _reference_f32(cls_emb, w_proj, b_proj, w_dense, b_dense):
    # Pure f32 reference matching the PyTorch module exactly (one group).
    proj = cls_emb @ w_proj.T + b_proj
    attn = jax.nn.softmax(proj @ cls_emb.T, axis=1)
    attn_out = attn @ cls_emb
    cat = jnp.concatenate([cls_emb, attn_out], axis=1)
    score = (cat @ w_dense.T + b_dense)[:, 0]
    return score, cat


def _reference_mixed(cls_emb, w_proj, b_proj, w_dense, b_dense):
    # Reference mirroring the kernel's precision: bf16 operands only on the
    # H x H proj matmul (f32 accumulation); everything else f32.
    proj = lax.dot_general(
        cls_emb.astype(jnp.bfloat16), w_proj.astype(jnp.bfloat16),
        (((1,), (1,)), ((), ())),
        preferred_element_type=jnp.float32) + b_proj
    attn = jax.nn.softmax(proj @ cls_emb.T, axis=1)
    attn_out = attn @ cls_emb
    cat = jnp.concatenate([cls_emb, attn_out], axis=1)
    score = jnp.sum(cat * w_dense, axis=1) + b_dense[0]
    return score, cat


if __name__ == "__main__":
    N = 8      # batch_size: candidate docs scored jointly per group
    H = 128    # hidden_size of the (synthetic) encoder
    G = 16     # independent scoring groups batched into one pallas_call
    GB = 8     # groups per grid step (use >=16 in prod to fill the MXU M dim)

    key = jax.random.PRNGKey(0)
    k_cls, k_wp, k_bp, k_wd, k_bd = jax.random.split(key, 5)

    # Synthetic CLS embeddings standing in for self._model(...)[0][:, 0, :]
    cls_emb = jax.random.normal(k_cls, (G, N, H), dtype=jnp.float32)

    # Parameters (shapes from nn.Linear(H, H) and nn.Linear(2H, 1))
    w_proj = jax.random.normal(k_wp, (H, H), dtype=jnp.float32) * 0.02
    b_proj = jax.random.normal(k_bp, (H,), dtype=jnp.float32) * 0.02
    w_dense = jax.random.normal(k_wd, (1, 2 * H), dtype=jnp.float32) * 0.02
    b_dense = jax.random.normal(k_bd, (1,), dtype=jnp.float32) * 0.02

    # One-time parameter prep (outside the hot path, per review).
    w_proj_bf16 = prepare_proj_weight(w_proj)

    score, logits_cat = bert_global_cat_head(
        cls_emb, w_proj_bf16, b_proj, w_dense, b_dense, group_block=GB)
    jax.block_until_ready((score, logits_cat))
    assert score.shape == (G, N) and logits_cat.shape == (G, N, 2 * H)

    # Tight check vs. a reference with the kernel's exact precision recipe.
    mx_score, mx_cat = jax.vmap(
        _reference_mixed, in_axes=(0, None, None, None, None))(
            cls_emb, w_proj, b_proj, w_dense, b_dense)
    assert jnp.allclose(score, mx_score, atol=5e-3, rtol=5e-3)
    assert jnp.allclose(logits_cat, mx_cat, atol=5e-3, rtol=5e-3)

    # Loose check vs. exact f32 module semantics (only proj is bf16 now).
    f32_score, f32_cat = jax.vmap(
        _reference_f32, in_axes=(0, None, None, None, None))(
            cls_emb, w_proj, b_proj, w_dense, b_dense)
    assert jnp.allclose(score, f32_score, atol=1e-1, rtol=1e-1)
    assert jnp.allclose(logits_cat, f32_cat, atol=1e-1, rtol=1e-1)

    # Single-group (module-equivalent) interface still works and agrees.
    s1, c1 = bert_global_cat_head(
        cls_emb[0], w_proj_bf16, b_proj, w_dense, b_dense, group_block=GB)
    jax.block_until_ready((s1, c1))
    assert s1.shape == (N,) and c1.shape == (N, 2 * H)
    assert jnp.allclose(s1, score[0], atol=1e-4, rtol=1e-4)
    assert jnp.allclose(c1, logits_cat[0], atol=1e-4, rtol=1e-4)

    print("KERNEL_OK")
</pallas_src>

<mosaic_0001>
module attributes {stable_mosaic.version = 11 : i64} {
  func.func @_head_kernel(%arg0: i32, %arg1: memref<8x8x128xf32, #tpu.memory_space<vmem>>, %arg2: memref<128x128xbf16, #tpu.memory_space<vmem>>, %arg3: memref<1x128xf32, #tpu.memory_space<vmem>>, %arg4: memref<1x256xf32, #tpu.memory_space<vmem>>, %arg5: memref<1xf32, #tpu.memory_space<smem>>, %arg6: memref<8x8xf32, #tpu.memory_space<vmem>>, %arg7: memref<8x8x256xf32, #tpu.memory_space<vmem>>) attributes {dimension_semantics = [#tpu.dimension_semantics<parallel>], iteration_bounds = array<i64: 2>, scalar_prefetch = 0 : i64, scratch_operands = 0 : i64, tpu.core_type = #tpu.core_type<tc>, window_params = [{transform_indices = @transform_0, window_bounds = array<i64: 8, 8, 128>}, {pipeline_mode = #tpu.pipeline_mode<synchronous>, transform_indices = @transform_1, window_bounds = array<i64: 128, 128>}, {pipeline_mode = #tpu.pipeline_mode<synchronous>, transform_indices = @transform_2, window_bounds = array<i64: 1, 128>}, {pipeline_mode = #tpu.pipeline_mode<synchronous>, transform_indices = @transform_3, window_bounds = array<i64: 1, 256>}, {transform_indices = @transform_4, window_bounds = array<i64: 1>}, {transform_indices = @transform_5, window_bounds = array<i64: 8, 8>}, {transform_indices = @transform_6, window_bounds = array<i64: 8, 8, 256>}]} {
    %c0 = arith.constant 0 : index
    %c0_0 = arith.constant 0 : index
    %c0_1 = arith.constant 0 : index
    %0 = vector.load %arg1[%c0, %c0_0, %c0_1] : memref<8x8x128xf32, #tpu.memory_space<vmem>>, vector<8x8x128xf32>
    %1 = vector.shape_cast %0 : vector<8x8x128xf32> to vector<64x128xf32>
    %2 = arith.truncf %1 : vector<64x128xf32> to vector<64x128xbf16>
    %c0_2 = arith.constant 0 : index
    %c0_3 = arith.constant 0 : index
    %3 = vector.load %arg2[%c0_2, %c0_3] : memref<128x128xbf16, #tpu.memory_space<vmem>>, vector<128x128xbf16>
    %cst = arith.constant dense<0.000000e+00> : vector<64x128xf32>
    %4 = tpu.matmul %2, %3, %cst {dimension_numbers = #tpu.dot_dimension_numbers<[1], [1], [0], [0], [0, 0, 1, 0], [], []>} : vector<64x128xbf16>, vector<128x128xbf16>, vector<64x128xf32> -> vector<64x128xf32>
    %c0_4 = arith.constant 0 : index
    %c0_5 = arith.constant 0 : index
    %5 = vector.load %arg3[%c0_4, %c0_5] : memref<1x128xf32, #tpu.memory_space<vmem>>, vector<1x128xf32>
    %6 = vector.broadcast %5 : vector<1x128xf32> to vector<64x128xf32>
    %7 = arith.addf %4, %6 : vector<64x128xf32>
    %8 = vector.shape_cast %7 : vector<64x128xf32> to vector<8x8x128xf32>
    "tpu.trace_start"() <{level = 10 : i32, message = "gqh,gkh->gqk"}> : () -> ()
    %cst_6 = arith.constant dense<0.000000e+00> : vector<8x8x8xf32>
    %9 = tpu.matmul %8, %0, %cst_6 {dimension_numbers = #tpu.dot_dimension_numbers<[2], [2], [1], [1], [0, 0, 0, 1, 1, 1], [0], [0]>} : vector<8x8x128xf32>, vector<8x8x128xf32>, vector<8x8x8xf32> -> vector<8x8x8xf32>
    "tpu.trace_stop"() : () -> ()
    %cst_7 = arith.constant dense<0xFF800000> : vector<8x8xf32>
    %10 = vector.multi_reduction <maximumf>, %9, %cst_7 [2] : vector<8x8x8xf32> to vector<8x8xf32>
    %11 = vector.shape_cast %10 : vector<8x8xf32> to vector<8x8x1xf32>
    %12 = vector.broadcast %11 : vector<8x8x1xf32> to vector<8x8x8xf32>
    %13 = arith.subf %9, %12 : vector<8x8x8xf32>
    %14 = math.exp %13 : vector<8x8x8xf32>
    %cst_8 = arith.constant dense<0.000000e+00> : vector<8x8xf32>
    %15 = vector.multi_reduction <add>, %14, %cst_8 [2] : vector<8x8x8xf32> to vector<8x8xf32>
    %16 = vector.shape_cast %15 : vector<8x8xf32> to vector<8x8x1xf32>
    %17 = vector.broadcast %16 : vector<8x8x1xf32> to vector<8x8x8xf32>
    %18 = arith.divf %14, %17 : vector<8x8x8xf32>
    "tpu.trace_start"() <{level = 10 : i32, message = "gqk,gkh->gqh"}> : () -> ()
    %cst_9 = arith.constant dense<0.000000e+00> : vector<8x8x128xf32>
    %19 = tpu.matmul %18, %0, %cst_9 {dimension_numbers = #tpu.dot_dimension_numbers<[2], [1], [1], [2], [0, 0, 0, 1, 1, 2], [0], [0]>} : vector<8x8x8xf32>, vector<8x8x128xf32>, vector<8x8x128xf32> -> vector<8x8x128xf32>
    "tpu.trace_stop"() : () -> ()
    %c0_10 = arith.constant 0 : index
    %c0_11 = arith.constant 0 : index
    %c0_12 = arith.constant 0 : index
    %20 = vector.load %arg7[%c0_10, %c0_11, %c0_12] : memref<8x8x256xf32, #tpu.memory_space<vmem>>, vector<8x8x128xf32>
    tpu.vector_store %arg7[%c0_10, %c0_11, %c0_12], %0 {strides = array<i32>} : memref<8x8x256xf32, #tpu.memory_space<vmem>>, vector<8x8x128xf32>,
    %c0_13 = arith.constant 0 : index
    %c0_14 = arith.constant 0 : index
    %c128 = arith.constant 128 : index
    %21 = vector.load %arg7[%c0_13, %c0_14, %c128] : memref<8x8x256xf32, #tpu.memory_space<vmem>>, vector<8x8x128xf32>
    tpu.vector_store %arg7[%c0_13, %c0_14, %c128], %19 {strides = array<i32>} : memref<8x8x256xf32, #tpu.memory_space<vmem>>, vector<8x8x128xf32>,
    %c0_15 = arith.constant 0 : index
    %c0_16 = arith.constant 0 : index
    %22 = vector.load %arg4[%c0_15, %c0_16] : memref<1x256xf32, #tpu.memory_space<vmem>>, vector<1x256xf32>
    %23 = vector.extract_strided_slice %22 {offsets = [0, 0], sizes = [1, 128], strides = [1, 1]} : vector<1x256xf32> to vector<1x128xf32>
    %24 = vector.shape_cast %23 : vector<1x128xf32> to vector<1x1x128xf32>
    %25 = vector.extract_strided_slice %22 {offsets = [0, 128], sizes = [1, 128], strides = [1, 1]} : vector<1x256xf32> to vector<1x128xf32>
    %26 = vector.shape_cast %25 : vector<1x128xf32> to vector<1x1x128xf32>
    %27 = vector.broadcast %24 : vector<1x1x128xf32> to vector<8x8x128xf32>
    %28 = arith.mulf %0, %27 : vector<8x8x128xf32>
    %cst_17 = arith.constant dense<0.000000e+00> : vector<8x8xf32>
    %29 = vector.multi_reduction <add>, %28, %cst_17 [2] : vector<8x8x128xf32> to vector<8x8xf32>
    %30 = vector.broadcast %26 : vector<1x1x128xf32> to vector<8x8x128xf32>
    %31 = arith.mulf %19, %30 : vector<8x8x128xf32>
    %cst_18 = arith.constant dense<0.000000e+00> : vector<8x8xf32>
    %32 = vector.multi_reduction <add>, %31, %cst_18 [2] : vector<8x8x128xf32> to vector<8x8xf32>
    %33 = arith.addf %29, %32 : vector<8x8xf32>
    %c0_19 = arith.constant 0 : index
    %34 = memref.load %arg5[%c0_19] : memref<1xf32, #tpu.memory_space<smem>>
    %35 = vector.broadcast %34 : f32 to vector<8x8xf32>
    %36 = arith.addf %33, %35 : vector<8x8xf32>
    %c0_20 = arith.constant 0 : index
    %c0_21 = arith.constant 0 : index
    %37 = vector.load %arg6[%c0_20, %c0_21] : memref<8x8xf32, #tpu.memory_space<vmem>>, vector<8x8xf32>
    tpu.vector_store %arg6[%c0_20, %c0_21], %36 {strides = array<i32>} : memref<8x8xf32, #tpu.memory_space<vmem>>, vector<8x8xf32>,
    return
  }
  func.func @transform_0(%arg0: i32) -> (i32, i32, i32) {
    %c0_i32 = arith.constant 0 : i32
    %c0_i32_0 = arith.constant 0 : i32
    %c0_i32_1 = arith.constant 0 : i32
    return %arg0, %c0_i32, %c0_i32_0 : i32, i32, i32
  }
  func.func @transform_1(%arg0: i32) -> (i32, i32) {
    %c0_i32 = arith.constant 0 : i32
    %c0_i32_0 = arith.constant 0 : i32
    %c0_i32_1 = arith.constant 0 : i32
    return %c0_i32, %c0_i32_0 : i32, i32
  }
  func.func @transform_2(%arg0: i32) -> (i32, i32) {
    %c0_i32 = arith.constant 0 : i32
    %c0_i32_0 = arith.constant 0 : i32
    %c0_i32_1 = arith.constant 0 : i32
    return %c0_i32, %c0_i32_0 : i32, i32
  }
  func.func @transform_3(%arg0: i32) -> (i32, i32) {
    %c0_i32 = arith.constant 0 : i32
    %c0_i32_0 = arith.constant 0 : i32
    %c0_i32_1 = arith.constant 0 : i32
    return %c0_i32, %c0_i32_0 : i32, i32
  }
  func.func @transform_4(%arg0: i32) -> i32 {
    %c0_i32 = arith.constant 0 : i32
    %c0_i32_0 = arith.constant 0 : i32
    return %c0_i32 : i32
  }
  func.func @transform_5(%arg0: i32) -> (i32, i32) {
    %c0_i32 = arith.constant 0 : i32
    %c0_i32_0 = arith.constant 0 : i32
    return %arg0, %c0_i32 : i32, i32
  }
  func.func @transform_6(%arg0: i32) -> (i32, i32, i32) {
    %c0_i32 = arith.constant 0 : i32
    %c0_i32_0 = arith.constant 0 : i32
    %c0_i32_1 = arith.constant 0 : i32
    return %arg0, %c0_i32, %c0_i32_0 : i32, i32, i32
  }
}

</mosaic_0001>

<llo_original>
// kernel: tpu_custom_call.1
$region0: #{tpu_custom_call.1}
  #allocation0 [shape = 'u32[]', space=smem, size = 0x4, offset = 0x4, fixed_abs, tag = 'smem constant byte address 0x4 - core index']
  #allocation1 [shape = 'u32[144,128]{1,0:T(1,128)}', space=vmem, size = 0x12000, scoped, tag = 'internal scratch']
  #allocation2 [shape = 'f32[1]{0:T(128)S(6)}', space=smem, size = 0x200, scoped, tag = 'scoped memory for tpu_custom_call.1']
  %s0 = inlined_call_operand.hbm [shape: f32[16,8,128], index: 0, kind: input, shape index: {}]
  %s1 = inlined_call_operand.hbm [shape: bf16[128,128], index: 1, kind: input, shape index: {}]
  %s2 = inlined_call_operand.vmem [shape: f32[1,128], index: 2, kind: input, shape index: {}]
  %s3 = inlined_call_operand.vmem [shape: f32[1,256], index: 3, kind: input, shape index: {}]
  %s4 = inlined_call_operand.<no memory space> [shape: f32[1], index: 4, kind: input, shape index: {}]
  %s5 = inlined_call_operand.vmem [shape: f32[16,8], index: 5, kind: output, shape index: {0}]
  %s6 = inlined_call_operand.hbm [shape: f32[16,8,256], index: 6, kind: output, shape index: {1}]
  %7 = xla_tuple %s5, %s6
  %s8 = sld [smem:[#allocation0]]
  $region69: #{tpu_custom_call.1} parent=0
    _
  %s10 = ssub.s32 1, %s8
  %s11 = scalar_select 0, %s10, %s8
  %12 = sst [smem:[#allocation2]] %s4
  $region1: #{tpu_custom_call.1} parent=0
    #allocation3 [shape = 'u8[65536]{0}', space=vmem, size = 0x10000, scoped, tag = 'input window, operand 0']
    #allocation4 [shape = 's32[2]{0}', space=sflag, size = 0x8, scoped, tag = 'scoped memory for tpu_custom_call.1']
    #allocation5 [shape = 's32[2]{0}', space=sflag, size = 0x8, scoped, tag = 'scoped memory for tpu_custom_call.1']
    #allocation6 [shape = 'u8[32768]{0}', space=vmem, size = 0x8000, scoped, tag = 'input window, operand 1, single buffered']
    #allocation7 [shape = 's32[1]{0}', space=sflag, size = 0x4, scoped, tag = 'scoped memory for tpu_custom_call.1']
    #allocation8 [shape = 'u8[131072]{0}', space=vmem, size = 0x20000, scoped, tag = 'output window, operand 1']
    %13 = vsyncpa [#allocation4], 0
    %s14 = scalar_lea.sflag [#allocation4], 1
    %15 = vsyncpa %s14, 0
    %16 = vsyncpa [#allocation7], 0
    %17 = vsyncpa [#allocation5], 0
    %s18 = scalar_lea.sflag [#allocation5], 1
    %19 = vsyncpa %s18, 0
    loop: start=0, step=1, limit=4
    $region2: #{tpu_custom_call.1} parent=1 // loop_pre_header
      _
    $region3: #{tpu_custom_call.1} parent=1 // loop_header
      %s21 = sphi 0, %s25
      %p22 = scmp.ge.s32.totalorder %s21, 4
      %s31 = sphi 0, %s33
      %s34 = sphi 0, %s31
      %s35 = sphi 0, %s34
      %s51 = sphi 0, %s35
      %s55 = sphi 0, %s55
      %s57 = sphi 0, %s55
      %s58 = sphi 0, %s57
      %s72 = sphi 0, %s58
      %s76 = sphi 0, %s76
      %s78 = sphi 0, %s76
      %s79 = sphi 0, %s78
      %s93 = sphi 0, %s79
      %s97 = sphi 0, %s97
      %s99 = sphi 0, %s97
      %s100 = sphi 0, %s99
      %s114 = sphi 0, %s100
      %s118 = sphi 0, %s118
      %s120 = sphi 0, %s118
      %s121 = sphi 0, %s120
      %s135 = sphi 0, %s121
      %s141 = sphi 0, %s143
      %s144 = sphi 0, %s141
      %s145 = sphi 0, %s144
      %s161 = sphi 0, %s145
      %s167 = sphi 0, %s169
      %s170 = sphi 0, %s167
      %s171 = sphi 0, %s170
      %s187 = sphi 0, %s171
    $region4: #{tpu_custom_call.1} parent=1 // loop_header_branch
      %24 = sbr.rel (%p22) target = $region8
    $region5: #{tpu_custom_call.1} parent=1 // loop_body
      %s26 = ssub.s32 %s21, 1
      %s27 = ssub.s32 %s21, 2
      %s28 = sadd.s32 %s21, 1
      %s29 = ssub.s32 %s21, %s28
      %p30 = scmp.eq.s32.totalorder %s29, 0
      %s32 = sadd.s32 %s31, 1
      %s33 = scalar_select %p30, %s31, %s32
      %p36 = pneg %p30
      %p37 = scmp.eq.s32.totalorder %s21, 1
      %p38 = por %p36, %p37
      %p39 = scmp.ne.s32.totalorder %s31, %s34
      %p40 = scmp.eq.s32.totalorder %s21, 0
      %p41 = por %p39, %p40
      %p42 = scmp.ne.s32.totalorder %s31, %s34
      %p43 = scmp.eq.s32.totalorder %s26, 1
      %p44 = por %p42, %p43
      %p45 = scmp.ne.s32.totalorder %s34, %s35
      %p46 = scmp.eq.s32.totalorder %s26, 0
      %p47 = por %p45, %p46
      %p48 = scmp.ne.s32.totalorder %s34, %s35
      %p49 = scmp.eq.s32.totalorder %s27, 1
      %p50 = por %p48, %p49
      %p52 = scmp.ne.s32.totalorder %s35, %s51
      %p53 = scmp.eq.s32.totalorder %s27, 0
      %p54 = por %p52, %p53
      %s56 = sadd.s32 %s55, 1
      %p59 = scmp.eq.s32.totalorder %s21, 1
      %p60 = scmp.ne.s32.totalorder %s55, %s57
      %p61 = scmp.eq.s32.totalorder %s21, 0
      %p62 = por %p60, %p61
      %p63 = scmp.ne.s32.totalorder %s55, %s57
      %p64 = scmp.eq.s32.totalorder %s26, 1
      %p65 = por %p63, %p64
      %p66 = scmp.ne.s32.totalorder %s57, %s58
      %p67 = scmp.eq.s32.totalorder %s26, 0
      %p68 = por %p66, %p67
      %p69 = scmp.ne.s32.totalorder %s57, %s58
      %p70 = scmp.eq.s32.totalorder %s27, 1
      %p71 = por %p69, %p70
      %p73 = scmp.ne.s32.totalorder %s58, %s72
      %p74 = scmp.eq.s32.totalorder %s27, 0
      %p75 = por %p73, %p74
      %s77 = sadd.s32 %s76, 1
      %p80 = scmp.eq.s32.totalorder %s21, 1
      %p81 = scmp.ne.s32.totalorder %s76, %s78
      %p82 = scmp.eq.s32.totalorder %s21, 0
      %p83 = por %p81, %p82
      %p84 = scmp.ne.s32.totalorder %s76, %s78
      %p85 = scmp.eq.s32.totalorder %s26, 1
      %p86 = por %p84, %p85
      %p87 = scmp.ne.s32.totalorder %s78, %s79
      %p88 = scmp.eq.s32.totalorder %s26, 0
      %p89 = por %p87, %p88
      %p90 = scmp.ne.s32.totalorder %s78, %s79
      %p91 = scmp.eq.s32.totalorder %s27, 1
      %p92 = por %p90, %p91
      %p94 = scmp.ne.s32.totalorder %s79, %s93
      %p95 = scmp.eq.s32.totalorder %s27, 0
      %p96 = por %p94, %p95
      %s98 = sadd.s32 %s97, 1
      %p101 = scmp.eq.s32.totalorder %s21, 1
      %p102 = scmp.ne.s32.totalorder %s97, %s99
      %p103 = scmp.eq.s32.totalorder %s21, 0
      %p104 = por %p102, %p103
      %p105 = scmp.ne.s32.totalorder %s97, %s99
      %p106 = scmp.eq.s32.totalorder %s26, 1
      %p107 = por %p105, %p106
      %p108 = scmp.ne.s32.totalorder %s99, %s100
      %p109 = scmp.eq.s32.totalorder %s26, 0
      %p110 = por %p108, %p109
      %p111 = scmp.ne.s32.totalorder %s99, %s100
      %p112 = scmp.eq.s32.totalorder %s27, 1
      %p113 = por %p111, %p112
      %p115 = scmp.ne.s32.totalorder %s100, %s114
      %p116 = scmp.eq.s32.totalorder %s27, 0
      %p117 = por %p115, %p116
      %s119 = sadd.s32 %s118, 1
      %p122 = scmp.eq.s32.totalorder %s21, 1
      %p123 = scmp.ne.s32.totalorder %s118, %s120
      %p124 = scmp.eq.s32.totalorder %s21, 0
      %p125 = por %p123, %p124
      %p126 = scmp.ne.s32.totalorder %s118, %s120
      %p127 = scmp.eq.s32.totalorder %s26, 1
      %p128 = por %p126, %p127
      %p129 = scmp.ne.s32.totalorder %s120, %s121
      %p130 = scmp.eq.s32.totalorder %s26, 0
      %p131 = por %p129, %p130
      %p132 = scmp.ne.s32.totalorder %s120, %s121
      %p133 = scmp.eq.s32.totalorder %s27, 1
      %p134 = por %p132, %p133
      %p136 = scmp.ne.s32.totalorder %s121, %s135
      %p137 = scmp.eq.s32.totalorder %s27, 0
      %p138 = por %p136, %p137
      %s139 = ssub.s32 %s21, %s28
      %p140 = scmp.eq.s32.totalorder %s139, 0
      %s142 = sadd.s32 %s141, 1
      %s143 = scalar_select %p140, %s141, %s142
      %p146 = pneg %p140
      %p147 = scmp.eq.s32.totalorder %s21, 1
      %p148 = por %p146, %p147
      %p149 = scmp.ne.s32.totalorder %s141, %s144
      %p150 = scmp.eq.s32.totalorder %s21, 0
      %p151 = por %p149, %p150
      %p152 = scmp.ne.s32.totalorder %s141, %s144
      %p153 = scmp.eq.s32.totalorder %s26, 1
      %p154 = por %p152, %p153
      %p155 = scmp.ne.s32.totalorder %s144, %s145
      %p156 = scmp.eq.s32.totalorder %s26, 0
      %p157 = por %p155, %p156
      %p158 = scmp.ne.s32.totalorder %s144, %s145
      %p159 = scmp.eq.s32.totalorder %s27, 1
      %p160 = por %p158, %p159
      %p162 = scmp.ne.s32.totalorder %s145, %s161
      %p163 = scmp.eq.s32.totalorder %s27, 0
      %p164 = por %p162, %p163
      %s165 = ssub.s32 %s21, %s28
      %p166 = scmp.eq.s32.totalorder %s165, 0
      %s168 = sadd.s32 %s167, 1
      %s169 = scalar_select %p166, %s167, %s168
      %p172 = pneg %p166
      %p173 = scmp.eq.s32.totalorder %s21, 1
      %p174 = por %p172, %p173
      %p175 = scmp.ne.s32.totalorder %s167, %s170
      %p176 = scmp.eq.s32.totalorder %s21, 0
      %p177 = por %p175, %p176
      %p178 = scmp.ne.s32.totalorder %s167, %s170
      %p179 = scmp.eq.s32.totalorder %s26, 1
      %p180 = por %p178, %p179
      %p181 = scmp.ne.s32.totalorder %s170, %s171
      %p182 = scmp.eq.s32.totalorder %s26, 0
      %p183 = por %p181, %p182
      %p184 = scmp.ne.s32.totalorder %s170, %s171
      %p185 = scmp.eq.s32.totalorder %s27, 1
      %p186 = por %p184, %p185
      %p188 = scmp.ne.s32.totalorder %s171, %s187
      %p189 = scmp.eq.s32.totalorder %s27, 0
      %p190 = por %p188, %p189
      %p191 = scmp.le.s32.totalorder 1, %s21
      %p192 = scmp.lt.s32.totalorder %s21, 3
      %p193 = pnand %p191, %p192
      %p194 = pneg %p193
      // Predicated region
      $region9: #{tpu_custom_call.1} parent=5 // pred_check
        _
      $region10: #{tpu_custom_call.1} parent=5 // pred_check_branch
        %196 = sbr.rel (%p193) target = $region12
      $region11: #{tpu_custom_call.1} parent=5 // pred_region
        %s197 = ssub.s32 %s21, 1
        // Predicated region
        $region13: #{tpu_custom_call.1} parent=11 // pred_check
          %p198 = pneg %p68
        $region14: #{tpu_custom_call.1} parent=11 // pred_check_branch
          %200 = sbr.rel (%p198) target = $region16
        $region15: #{tpu_custom_call.1} parent=11 // pred_region
          %s202 = ssub.s32 1024, 1024
          %203 = vsyncadd [#allocation7], %s202
          %s204 = sshll.u32 [#allocation6], 4
          %s205 = int_to_ptr.vmem [resolvable:$true] %s204
          %210 = dma.hbm_to_vmem [thread:$0]  %s1, 1024, %s205, [#allocation7], 64, 64, 4
        $region16: #{tpu_custom_call.1} parent=11 // pred_fallthru
          _
        // Predicated region
        $region17: #{tpu_custom_call.1} parent=11 // pred_check
          %p211 = pneg %p89
        $region18: #{tpu_custom_call.1} parent=11 // pred_check_branch
          %213 = sbr.rel (%p211) target = $region20
        $region19: #{tpu_custom_call.1} parent=11 // pred_region
          _
        $region20: #{tpu_custom_call.1} parent=11 // pred_fallthru
          _
        // Predicated region
        $region21: #{tpu_custom_call.1} parent=11 // pred_check
          %p214 = pneg %p110
        $region22: #{tpu_custom_call.1} parent=11 // pred_check_branch
          %216 = sbr.rel (%p214) target = $region24
        $region23: #{tpu_custom_call.1} parent=11 // pred_region
          _
        $region24: #{tpu_custom_call.1} parent=11 // pred_fallthru
          _
        // Predicated region
        $region25: #{tpu_custom_call.1} parent=11 // pred_check
          %p217 = pneg %p131
        $region26: #{tpu_custom_call.1} parent=11 // pred_check_branch
          %219 = sbr.rel (%p217) target = $region28
        $region27: #{tpu_custom_call.1} parent=11 // pred_region
          _
        $region28: #{tpu_custom_call.1} parent=11 // pred_fallthru
          _
      $region12: #{tpu_custom_call.1} parent=5 // pred_fallthru
        _
      %p220 = scmp.lt.s32.totalorder %s21, 2
      // Predicated region
      $region29: #{tpu_custom_call.1} parent=5 // pred_check
        %p221 = pneg %p220
      $region30: #{tpu_custom_call.1} parent=5 // pred_check_branch
        %223 = sbr.rel (%p221) target = $region32
      $region31: #{tpu_custom_call.1} parent=5 // pred_region
        // Predicated region
        $region33: #{tpu_custom_call.1} parent=31 // pred_check
          %p224 = pneg %p41
        $region34: #{tpu_custom_call.1} parent=31 // pred_check_branch
          %226 = sbr.rel (%p224) target = $region36
        $region35: #{tpu_custom_call.1} parent=31 // pred_region
          %s227 = sand.u32 %s31, 1
          %s228 = scalar_lea.sflag [#allocation4], %s227
          %s229 = sand.u32 %s31, 1
          %s230 = smul.addr %s229, 64
          %s231 = scalar_lea.vmem [#allocation3], %s230
          %s232 = smul.u32 8, %s21
          %s234 = ssub.s32 1024, 1024
          %235 = vsyncadd %s228, %s234
          %s236 = smul.addr %s232, 128
          %s237 = scalar_lea.hbm %s0, %s236
          %s238 = sshll.u32 %s231, 4
          %s239 = int_to_ptr.vmem [resolvable:$true] %s238
          %244 = dma.hbm_to_vmem [thread:$0]  %s237, 1024, %s239, %s228, 128, 128, 8
        $region36: #{tpu_custom_call.1} parent=31 // pred_fallthru
          _
      $region32: #{tpu_custom_call.1} parent=5 // pred_fallthru
        _
      %p245 = scmp.le.s32.totalorder 1, %s21
      %p246 = scmp.lt.s32.totalorder %s21, 3
      %p247 = pnand %p245, %p246
      %p248 = pneg %p247
      // Predicated region
      $region37: #{tpu_custom_call.1} parent=5 // pred_check
        _
      $region38: #{tpu_custom_call.1} parent=5 // pred_check_branch
        %250 = sbr.rel (%p247) target = $region40
      $region39: #{tpu_custom_call.1} parent=5 // pred_region
        %s251 = ssub.s32 %s21, 1
        %s252 = sand.u32 %s34, 1
        %s253 = scalar_lea.sflag [#allocation4], %s252
        %s254 = sand.u32 %s34, 1
        %s255 = smul.addr %s254, 64
        %s256 = scalar_lea.vmem [#allocation3], %s255
        // Predicated region
        $region41: #{tpu_custom_call.1} parent=39 // pred_check
          %p257 = pneg %p47
        $region42: #{tpu_custom_call.1} parent=39 // pred_check_branch
          %259 = sbr.rel (%p257) target = $region44
        $region43: #{tpu_custom_call.1} parent=39 // pred_region
          %260 = dma.done %s253, 1024
        $region44: #{tpu_custom_call.1} parent=39 // pred_fallthru
          _
        // Predicated region
        $region45: #{tpu_custom_call.1} parent=39 // pred_check
          %p261 = pneg %p68
        $region46: #{tpu_custom_call.1} parent=39 // pred_check_branch
          %263 = sbr.rel (%p261) target = $region48
        $region47: #{tpu_custom_call.1} parent=39 // pred_region
          %264 = dma.done [#allocation7], 1024
        $region48: #{tpu_custom_call.1} parent=39 // pred_fallthru
          _
        %s265 = sand.u32 %s34, 1
        %s266 = scalar_lea.sflag [#allocation4], %s265
        %s267 = sand.u32 %s34, 1
        %s268 = smul.addr %s267, 64
        %s269 = scalar_lea.vmem [#allocation3], %s268
        %p270 = pneg %p47
        %p271 = pneg %p44
        %p272 = pneg %p68
        %p273 = pneg %p65
        %p274 = pneg %p89
        %p275 = pneg %p86
        %p276 = pneg %p110
        %p277 = pneg %p107
        %p278 = pneg %p131
        %p279 = pneg %p128
        %p280 = pneg %p157
        %p281 = pneg %p154
        %p282 = scmp.lt.s32.totalorder %s26, 1
        %s283 = scalar_select %p282, %s26, 1
        %s284 = smul.addr %s283, 8
        %s285 = scalar_lea.vmem %s5, %s284
        %p286 = pneg %p183
        %p287 = pneg %p180
        %s288 = sand.u32 %s170, 1
        %s289 = scalar_lea.sflag [#allocation5], %s288
        %s290 = sand.u32 %s170, 1
        %s291 = smul.addr %s290, 128
        %s292 = scalar_lea.vmem [#allocation8], %s291
        %s293 = smul.u32 8, %s26
        %p294 = scmp.lt.s32.totalorder %s26, 1
        %s295 = scalar_select %p294, %s26, 1
        %s296 = smul.addr %s295, 8
        %s297 = scalar_lea.vmem %s5, %s296
        %s298 = smul.u32 8, %s26
        %v300 = vld [vmem:[%s256] sm:$0xff]
        %v301 = vld [vmem:[%s256 + $0x8] sm:$0xff]
        %v302 = vld [vmem:[%s256 + $0x10] sm:$0xff]
        %v303 = vld [vmem:[%s256 + $0x18] sm:$0xff]
        %v304 = vld [vmem:[%s256 + $0x20] sm:$0xff]
        %v305 = vld [vmem:[%s256 + $0x28] sm:$0xff]
        %v306 = vld [vmem:[%s256 + $0x30] sm:$0xff]
        %v307 = vld [vmem:[%s256 + $0x38] sm:$0xff]
        %v308 = vpack.c.bf16 %v301, %v300
        %v309 = vpack.c.bf16 %v303, %v302
        %v310 = vpack.c.bf16 %v305, %v304
        %v311 = vpack.c.bf16 %v307, %v306
        %v312 = vld [vmem:[#allocation6] sm:$0xf]
        %v313 = vld [vmem:[#allocation6 + $0x4] sm:$0xf]
        %v314 = vld [vmem:[#allocation6 + $0x8] sm:$0xf]
        %v315 = vld [vmem:[#allocation6 + $0xc] sm:$0xf]
        %v316 = vld [vmem:[#allocation6 + $0x10] sm:$0xf]
        %v317 = vld [vmem:[#allocation6 + $0x14] sm:$0xf]
        %v318 = vld [vmem:[#allocation6 + $0x18] sm:$0xf]
        %v319 = vld [vmem:[#allocation6 + $0x1c] sm:$0xf]
        %v320 = vld [vmem:[#allocation6 + $0x20] sm:$0xf]
        %v321 = vld [vmem:[#allocation6 + $0x24] sm:$0xf]
        %v322 = vld [vmem:[#allocation6 + $0x28] sm:$0xf]
        %v323 = vld [vmem:[#allocation6 + $0x2c] sm:$0xf]
        %v324 = vld [vmem:[#allocation6 + $0x30] sm:$0xf]
        %v325 = vld [vmem:[#allocation6 + $0x34] sm:$0xf]
        %v326 = vld [vmem:[#allocation6 + $0x38] sm:$0xf]
        %v327 = vld [vmem:[#allocation6 + $0x3c] sm:$0xf]
        %v328 = vld [vmem:[%s2] sm:$0x1]
        %v330 = vlaneseq
        %v331 = vshrl.u32 %v330, 7
        %v332 = vsub.s32 0, %v331
        %v333 = vrot.slane %v328, %v332
        %v351 = vunpack.c.l.b16 %v312
        %v352 = vunpack.c.l.b16 %v313
        %v353 = vunpack.c.l.b16 %v314
        %v354 = vunpack.c.l.b16 %v315
        %v355 = vunpack.c.l.b16 %v316
        %v356 = vunpack.c.l.b16 %v317
        %v357 = vunpack.c.l.b16 %v318
        %v358 = vunpack.c.l.b16 %v319
        %v359 = vunpack.c.l.b16 %v320
        %v360 = vunpack.c.l.b16 %v321
        %v361 = vunpack.c.l.b16 %v322
        %v362 = vunpack.c.l.b16 %v323
        %v363 = vunpack.c.l.b16 %v324
        %v364 = vunpack.c.l.b16 %v325
        %v365 = vunpack.c.l.b16 %v326
        %v366 = vunpack.c.l.b16 %v327
        %v367 = vpack.c.b16 %v352, %v351
        %v368 = vpack.c.b16 %v354, %v353
        %v369 = vpack.c.b16 %v356, %v355
        %v370 = vpack.c.b16 %v358, %v357
        %v371 = vpack.c.b16 %v360, %v359
        %v372 = vpack.c.b16 %v362, %v361
        %v373 = vpack.c.b16 %v364, %v363
        %v374 = vpack.c.b16 %v366, %v365
        %383 = vmatprep.subr.bf16.mxu0 0
        %384 = vmatpush1.bf16.xpose.msra.mxu0 %v374
        %385 = vmatprep.subr.bf16.mxu0 0
        %386 = vmatpush1.bf16.xpose.msra.mxu0 %v373
        %387 = vmatprep.subr.bf16.mxu0 0
        %388 = vmatpush1.bf16.xpose.msra.mxu0 %v372
        %389 = vmatprep.subr.bf16.mxu0 0
        %390 = vmatpush1.bf16.xpose.msra.mxu0 %v371
        %391 = vmatprep.subr.bf16.mxu0 0
        %392 = vmatpush1.bf16.xpose.msra.mxu0 %v370
        %393 = vmatprep.subr.bf16.mxu0 0
        %394 = vmatpush1.bf16.xpose.msra.mxu0 %v369
        %395 = vmatprep.subr.bf16.mxu0 0
        %396 = vmatpush1.bf16.xpose.msra.mxu0 %v368
        %397 = vmatprep.subr.bf16.mxu0 0
        %398 = vmatpush1.bf16.xpose.msra.mxu0 %v367
        %399 = vmatprep.subr.bf16.mxu0 0
        %400 = vmatpush2.bf16.xpose.msra.mxu0 0
        %401 = vmatprep.subr.bf16.mxu0 0
        %402 = vmatpush2.bf16.xpose.msra.mxu0 0
        %403 = vmatprep.subr.bf16.mxu0 0
        %404 = vmatpush2.bf16.xpose.msra.mxu0 0
        %405 = vmatprep.subr.bf16.mxu0 0
        %406 = vmatpush2.bf16.xpose.msra.mxu0 0
        %407 = vmatprep.subr.bf16.mxu0 0
        %408 = vmatpush2.bf16.xpose.msra.mxu0 0
        %409 = vmatprep.subr.bf16.mxu0 0
        %410 = vmatpush2.bf16.xpose.msra.mxu0 0
        %411 = vmatprep.subr.bf16.mxu0 0
        %412 = vmatpush2.bf16.xpose.msra.mxu0 0
        %413 = vmatprep.subr.bf16.mxu0 0
        %414 = vmatpush2.bf16.xpose.msra.mxu0 0
        %415 = vmatprep.mubr.bf16.mxu0 0
        %416 = vmatmul.mubr.bf16.gmra.mxu0 %v308
        %v417 = vpop.f32.mrf.mxu0
        %v418 = vadd.f32 %v333, %v417
        %v419 = vpop.f32.mrf.mxu0
        %v420 = vpop.f32.mrf.mxu0
        %v421 = vadd.f32 %v333, %v420
        %v422 = vpop.f32.mrf.mxu0
        %423 = vmatprep.mubr.bf16.mxu0 0
        %424 = vmatmul.mubr.bf16.gmra.mxu0 %v309
        %v425 = vpop.f32.mrf.mxu0
        %v426 = vadd.f32 %v333, %v425
        %v427 = vpop.f32.mrf.mxu0
        %v428 = vpop.f32.mrf.mxu0
        %v429 = vadd.f32 %v333, %v428
        %v430 = vpop.f32.mrf.mxu0
        %431 = vmatprep.mubr.bf16.mxu0 0
        %432 = vmatmul.mubr.bf16.gmra.mxu0 %v310
        %v433 = vpop.f32.mrf.mxu0
        %v434 = vadd.f32 %v333, %v433
        %v435 = vpop.f32.mrf.mxu0
        %v436 = vpop.f32.mrf.mxu0
        %v437 = vadd.f32 %v333, %v436
        %v438 = vpop.f32.mrf.mxu0
        %439 = vmatprep.mubr.bf16.mxu0 0
        %440 = vmatmul.mubr.bf16.gmra.mxu0 %v311
        %v441 = vpop.f32.mrf.mxu0
        %v442 = vadd.f32 %v333, %v441
        %v443 = vpop.f32.mrf.mxu0
        %v444 = vpop.f32.mrf.mxu0
        %v445 = vadd.f32 %v333, %v444
        %v446 = vpop.f32.mrf.mxu0
        %447 = vdwg.mxu0
        %448 = vmatprep.subr.mxu0 0.0
        %449 = vmatpush1.xpose.msra.mxu0 0.0
        %450 = vmatprep.subr.mxu0 0.0
        %451 = vmatpush1.xpose.msra.mxu0 0.0
        %452 = vmatprep.subr.mxu0 0.0
        %453 = vmatpush1.xpose.msra.mxu0 0.0
        %454 = vmatprep.subr.mxu0 0.0
        %455 = vmatpush1.xpose.msra.mxu0 0.0
        %456 = vmatprep.subr.mxu0 0.0
        %457 = vmatpush1.xpose.msra.mxu0 0.0
        %458 = vmatprep.subr.mxu0 0.0
        %459 = vmatpush1.xpose.msra.mxu0 0.0
        %460 = vmatprep.subr.mxu0 0.0
        %461 = vmatpush1.xpose.msra.mxu0 0.0
        %462 = vmatprep.subr.mxu0 0.0
        %463 = vmatpush1.xpose.msra.mxu0 0.0
        %464 = vmatprep.subr.mxu0 0.0
        %465 = vmatpush1.xpose.msra.mxu0 0.0
        %466 = vmatprep.subr.mxu0 0.0
        %467 = vmatpush1.xpose.msra.mxu0 0.0
        %468 = vmatprep.subr.mxu0 0.0
        %469 = vmatpush1.xpose.msra.mxu0 0.0
        %470 = vmatprep.subr.mxu0 0.0
        %471 = vmatpush1.xpose.msra.mxu0 0.0
        %472 = vmatprep.subr.mxu0 0.0
        %473 = vmatpush1.xpose.msra.mxu0 0.0
        %474 = vmatprep.subr.mxu0 0.0
        %475 = vmatpush1.xpose.msra.mxu0 0.0
        %476 = vmatprep.subr.mxu0 0.0
        %477 = vmatpush1.xpose.msra.mxu0 0.0
        %478 = vmatprep.subr.mxu0 0.0
        %479 = vmatpush1.xpose.msra.mxu0 %v300
        %480 = vmatprep.subr.mxu0 0.0
        %481 = vmatpush2.xpose.msra.mxu0 0.0
        %482 = vmatprep.subr.mxu0 0.0
        %483 = vmatpush2.xpose.msra.mxu0 0.0
        %484 = vmatprep.subr.mxu0 0.0
        %485 = vmatpush2.xpose.msra.mxu0 0.0
        %486 = vmatprep.subr.mxu0 0.0
        %487 = vmatpush2.xpose.msra.mxu0 0.0
        %488 = vmatprep.subr.mxu0 0.0
        %489 = vmatpush2.xpose.msra.mxu0 0.0
        %490 = vmatprep.subr.mxu0 0.0
        %491 = vmatpush2.xpose.msra.mxu0 0.0
        %492 = vmatprep.subr.mxu0 0.0
        %493 = vmatpush2.xpose.msra.mxu0 0.0
        %494 = vmatprep.subr.mxu0 0.0
        %495 = vmatpush2.xpose.msra.mxu0 0.0
        %496 = vmatprep.subr.mxu0 0.0
        %497 = vmatpush2.xpose.msra.mxu0 0.0
        %498 = vmatprep.subr.mxu0 0.0
        %499 = vmatpush2.xpose.msra.mxu0 0.0
        %500 = vmatprep.subr.mxu0 0.0
        %501 = vmatpush2.xpose.msra.mxu0 0.0
        %502 = vmatprep.subr.mxu0 0.0
        %503 = vmatpush2.xpose.msra.mxu0 0.0
        %504 = vmatprep.subr.mxu0 0.0
        %505 = vmatpush2.xpose.msra.mxu0 0.0
        %506 = vmatprep.subr.mxu0 0.0
        %507 = vmatpush2.xpose.msra.mxu0 0.0
        %508 = vmatprep.subr.mxu0 0.0
        %509 = vmatpush2.xpose.msra.mxu0 0.0
        %510 = vmatprep.subr.mxu0 0.0
        %511 = vmatpush2.xpose.msra.mxu0 0.0
        %512 = vmatprep.mubr.f32.mxu0 0.0
        %513 = vmatmul.mubr.f32.gmra.mxu0 %v418
        %v514 = vpop.f32.mrf.mxu0
        %v515 = vadd.f32 0.0, %v514
        %v516 = vpop.f32.mrf.mxu0
        %517 = vdwg.mxu0
        %518 = vmatprep.subr.mxu0 0.0
        %519 = vmatpush1.xpose.msra.mxu0 0.0
        %520 = vmatprep.subr.mxu0 0.0
        %521 = vmatpush1.xpose.msra.mxu0 0.0
        %522 = vmatprep.subr.mxu0 0.0
        %523 = vmatpush1.xpose.msra.mxu0 0.0
        %524 = vmatprep.subr.mxu0 0.0
        %525 = vmatpush1.xpose.msra.mxu0 0.0
        %526 = vmatprep.subr.mxu0 0.0
        %527 = vmatpush1.xpose.msra.mxu0 0.0
        %528 = vmatprep.subr.mxu0 0.0
        %529 = vmatpush1.xpose.msra.mxu0 0.0
        %530 = vmatprep.subr.mxu0 0.0
        %531 = vmatpush1.xpose.msra.mxu0 0.0
        %532 = vmatprep.subr.mxu0 0.0
        %533 = vmatpush1.xpose.msra.mxu0 0.0
        %534 = vmatprep.subr.mxu0 0.0
        %535 = vmatpush1.xpose.msra.mxu0 0.0
        %536 = vmatprep.subr.mxu0 0.0
        %537 = vmatpush1.xpose.msra.mxu0 0.0
        %538 = vmatprep.subr.mxu0 0.0
        %539 = vmatpush1.xpose.msra.mxu0 0.0
        %540 = vmatprep.subr.mxu0 0.0
        %541 = vmatpush1.xpose.msra.mxu0 0.0
        %542 = vmatprep.subr.mxu0 0.0
        %543 = vmatpush1.xpose.msra.mxu0 0.0
        %544 = vmatprep.subr.mxu0 0.0
        %545 = vmatpush1.xpose.msra.mxu0 0.0
        %546 = vmatprep.subr.mxu0 0.0
        %547 = vmatpush1.xpose.msra.mxu0 0.0
        %548 = vmatprep.subr.mxu0 0.0
        %549 = vmatpush1.xpose.msra.mxu0 %v301
        %550 = vmatprep.subr.mxu0 0.0
        %551 = vmatpush2.xpose.msra.mxu0 0.0
        %552 = vmatprep.subr.mxu0 0.0
        %553 = vmatpush2.xpose.msra.mxu0 0.0
        %554 = vmatprep.subr.mxu0 0.0
        %555 = vmatpush2.xpose.msra.mxu0 0.0
        %556 = vmatprep.subr.mxu0 0.0
        %557 = vmatpush2.xpose.msra.mxu0 0.0
        %558 = vmatprep.subr.mxu0 0.0
        %559 = vmatpush2.xpose.msra.mxu0 0.0
        %560 = vmatprep.subr.mxu0 0.0
        %561 = vmatpush2.xpose.msra.mxu0 0.0
        %562 = vmatprep.subr.mxu0 0.0
        %563 = vmatpush2.xpose.msra.mxu0 0.0
        %564 = vmatprep.subr.mxu0 0.0
        %565 = vmatpush2.xpose.msra.mxu0 0.0
        %566 = vmatprep.subr.mxu0 0.0
        %567 = vmatpush2.xpose.msra.mxu0 0.0
        %568 = vmatprep.subr.mxu0 0.0
        %569 = vmatpush2.xpose.msra.mxu0 0.0
        %570 = vmatprep.subr.mxu0 0.0
        %571 = vmatpush2.xpose.msra.mxu0 0.0
        %572 = vmatprep.subr.mxu0 0.0
        %573 = vmatpush2.xpose.msra.mxu0 0.0
        %574 = vmatprep.subr.mxu0 0.0
        %575 = vmatpush2.xpose.msra.mxu0 0.0
        %576 = vmatprep.subr.mxu0 0.0
        %577 = vmatpush2.xpose.msra.mxu0 0.0
        %578 = vmatprep.subr.mxu0 0.0
        %579 = vmatpush2.xpose.msra.mxu0 0.0
        %580 = vmatprep.subr.mxu0 0.0
        %581 = vmatpush2.xpose.msra.mxu0 0.0
        %582 = vmatprep.mubr.f32.mxu0 0.0
        %583 = vmatmul.mubr.f32.gmra.mxu0 %v421
        %v584 = vpop.f32.mrf.mxu0
        %v585 = vadd.f32 0.0, %v584
        %v586 = vpop.f32.mrf.mxu0
        %587 = vdwg.mxu0
        %588 = vmatprep.subr.mxu0 0.0
        %589 = vmatpush1.xpose.msra.mxu0 0.0
        %590 = vmatprep.subr.mxu0 0.0
        %591 = vmatpush1.xpose.msra.mxu0 0.0
        %592 = vmatprep.subr.mxu0 0.0
        %593 = vmatpush1.xpose.msra.mxu0 0.0
        %594 = vmatprep.subr.mxu0 0.0
        %595 = vmatpush1.xpose.msra.mxu0 0.0
        %596 = vmatprep.subr.mxu0 0.0
        %597 = vmatpush1.xpose.msra.mxu0 0.0
        %598 = vmatprep.subr.mxu0 0.0
        %599 = vmatpush1.xpose.msra.mxu0 0.0
        %600 = vmatprep.subr.mxu0 0.0
        %601 = vmatpush1.xpose.msra.mxu0 0.0
        %602 = vmatprep.subr.mxu0 0.0
        %603 = vmatpush1.xpose.msra.mxu0 0.0
        %604 = vmatprep.subr.mxu0 0.0
        %605 = vmatpush1.xpose.msra.mxu0 0.0
        %606 = vmatprep.subr.mxu0 0.0
        %607 = vmatpush1.xpose.msra.mxu0 0.0
        %608 = vmatprep.subr.mxu0 0.0
        %609 = vmatpush1.xpose.msra.mxu0 0.0
        %610 = vmatprep.subr.mxu0 0.0
        %611 = vmatpush1.xpose.msra.mxu0 0.0
        %612 = vmatprep.subr.mxu0 0.0
        %613 = vmatpush1.xpose.msra.mxu0 0.0
        %614 = vmatprep.subr.mxu0 0.0
        %615 = vmatpush1.xpose.msra.mxu0 0.0
        %616 = vmatprep.subr.mxu0 0.0
        %617 = vmatpush1.xpose.msra.mxu0 0.0
        %618 = vmatprep.subr.mxu0 0.0
        %619 = vmatpush1.xpose.msra.mxu0 %v302
        %620 = vmatprep.subr.mxu0 0.0
        %621 = vmatpush2.xpose.msra.mxu0 0.0
        %622 = vmatprep.subr.mxu0 0.0
        %623 = vmatpush2.xpose.msra.mxu0 0.0
        %624 = vmatprep.subr.mxu0 0.0
        %625 = vmatpush2.xpose.msra.mxu0 0.0
        %626 = vmatprep.subr.mxu0 0.0
        %627 = vmatpush2.xpose.msra.mxu0 0.0
        %628 = vmatprep.subr.mxu0 0.0
        %629 = vmatpush2.xpose.msra.mxu0 0.0
        %630 = vmatprep.subr.mxu0 0.0
        %631 = vmatpush2.xpose.msra.mxu0 0.0
        %632 = vmatprep.subr.mxu0 0.0
        %633 = vmatpush2.xpose.msra.mxu0 0.0
        %634 = vmatprep.subr.mxu0 0.0
        %635 = vmatpush2.xpose.msra.mxu0 0.0
        %636 = vmatprep.subr.mxu0 0.0
        %637 = vmatpush2.xpose.msra.mxu0 0.0
        %638 = vmatprep.subr.mxu0 0.0
        %639 = vmatpush2.xpose.msra.mxu0 0.0
        %640 = vmatprep.subr.mxu0 0.0
        %641 = vmatpush2.xpose.msra.mxu0 0.0
        %642 = vmatprep.subr.mxu0 0.0
        %643 = vmatpush2.xpose.msra.mxu0 0.0
        %644 = vmatprep.subr.mxu0 0.0
        %645 = vmatpush2.xpose.msra.mxu0 0.0
        %646 = vmatprep.subr.mxu0 0.0
        %647 = vmatpush2.xpose.msra.mxu0 0.0
        %648 = vmatprep.subr.mxu0 0.0
        %649 = vmatpush2.xpose.msra.mxu0 0.0
        %650 = vmatprep.subr.mxu0 0.0
        %651 = vmatpush2.xpose.msra.mxu0 0.0
        %652 = vmatprep.mubr.f32.mxu0 0.0
        %653 = vmatmul.mubr.f32.gmra.mxu0 %v426
        %v654 = vpop.f32.mrf.mxu0
        %v655 = vadd.f32 0.0, %v654
        %v656 = vpop.f32.mrf.mxu0
        %657 = vdwg.mxu0
        %658 = vmatprep.subr.mxu0 0.0
        %659 = vmatpush1.xpose.msra.mxu0 0.0
        %660 = vmatprep.subr.mxu0 0.0
        %661 = vmatpush1.xpose.msra.mxu0 0.0
        %662 = vmatprep.subr.mxu0 0.0
        %663 = vmatpush1.xpose.msra.mxu0 0.0
        %664 = vmatprep.subr.mxu0 0.0
        %665 = vmatpush1.xpose.msra.mxu0 0.0
        %666 = vmatprep.subr.mxu0 0.0
        %667 = vmatpush1.xpose.msra.mxu0 0.0
        %668 = vmatprep.subr.mxu0 0.0
        %669 = vmatpush1.xpose.msra.mxu0 0.0
        %670 = vmatprep.subr.mxu0 0.0
        %671 = vmatpush1.xpose.msra.mxu0 0.0
        %672 = vmatprep.subr.mxu0 0.0
        %673 = vmatpush1.xpose.msra.mxu0 0.0
        %674 = vmatprep.subr.mxu0 0.0
        %675 = vmatpush1.xpose.msra.mxu0 0.0
        %676 = vmatprep.subr.mxu0 0.0
        %677 = vmatpush1.xpose.msra.mxu0 0.0
        %678 = vmatprep.subr.mxu0 0.0
        %679 = vmatpush1.xpose.msra.mxu0 0.0
        %680 = vmatprep.subr.mxu0 0.0
        %681 = vmatpush1.xpose.msra.mxu0 0.0
        %682 = vmatprep.subr.mxu0 0.0
        %683 = vmatpush1.xpose.msra.mxu0 0.0
        %684 = vmatprep.subr.mxu0 0.0
        %685 = vmatpush1.xpose.msra.mxu0 0.0
        %686 = vmatprep.subr.mxu0 0.0
        %687 = vmatpush1.xpose.msra.mxu0 0.0
        %688 = vmatprep.subr.mxu0 0.0
        %689 = vmatpush1.xpose.msra.mxu0 %v303
        %690 = vmatprep.subr.mxu0 0.0
        %691 = vmatpush2.xpose.msra.mxu0 0.0
        %692 = vmatprep.subr.mxu0 0.0
        %693 = vmatpush2.xpose.msra.mxu0 0.0
        %694 = vmatprep.subr.mxu0 0.0
        %695 = vmatpush2.xpose.msra.mxu0 0.0
        %696 = vmatprep.subr.mxu0 0.0
        %697 = vmatpush2.xpose.msra.mxu0 0.0
        %698 = vmatprep.subr.mxu0 0.0
        %699 = vmatpush2.xpose.msra.mxu0 0.0
        %700 = vmatprep.subr.mxu0 0.0
        %701 = vmatpush2.xpose.msra.mxu0 0.0
        %702 = vmatprep.subr.mxu0 0.0
        %703 = vmatpush2.xpose.msra.mxu0 0.0
        %704 = vmatprep.subr.mxu0 0.0
        %705 = vmatpush2.xpose.msra.mxu0 0.0
        %706 = vmatprep.subr.mxu0 0.0
        %707 = vmatpush2.xpose.msra.mxu0 0.0
        %708 = vmatprep.subr.mxu0 0.0
        %709 = vmatpush2.xpose.msra.mxu0 0.0
        %710 = vmatprep.subr.mxu0 0.0
        %711 = vmatpush2.xpose.msra.mxu0 0.0
        %712 = vmatprep.subr.mxu0 0.0
        %713 = vmatpush2.xpose.msra.mxu0 0.0
        %714 = vmatprep.subr.mxu0 0.0
        %715 = vmatpush2.xpose.msra.mxu0 0.0
        %716 = vmatprep.subr.mxu0 0.0
        %717 = vmatpush2.xpose.msra.mxu0 0.0
        %718 = vmatprep.subr.mxu0 0.0
        %719 = vmatpush2.xpose.msra.mxu0 0.0
        %720 = vmatprep.subr.mxu0 0.0
        %721 = vmatpush2.xpose.msra.mxu0 0.0
        %722 = vmatprep.mubr.f32.mxu0 0.0
        %723 = vmatmul.mubr.f32.gmra.mxu0 %v429
        %v724 = vpop.f32.mrf.mxu0
        %v725 = vadd.f32 0.0, %v724
        %v726 = vpop.f32.mrf.mxu0
        %727 = vdwg.mxu0
        %728 = vmatprep.subr.mxu0 0.0
        %729 = vmatpush1.xpose.msra.mxu0 0.0
        %730 = vmatprep.subr.mxu0 0.0
        %731 = vmatpush1.xpose.msra.mxu0 0.0
        %732 = vmatprep.subr.mxu0 0.0
        %733 = vmatpush1.xpose.msra.mxu0 0.0
        %734 = vmatprep.subr.mxu0 0.0
        %735 = vmatpush1.xpose.msra.mxu0 0.0
        %736 = vmatprep.subr.mxu0 0.0
        %737 = vmatpush1.xpose.msra.mxu0 0.0
        %738 = vmatprep.subr.mxu0 0.0
        %739 = vmatpush1.xpose.msra.mxu0 0.0
        %740 = vmatprep.subr.mxu0 0.0
        %741 = vmatpush1.xpose.msra.mxu0 0.0
        %742 = vmatprep.subr.mxu0 0.0
        %743 = vmatpush1.xpose.msra.mxu0 0.0
        %744 = vmatprep.subr.mxu0 0.0
        %745 = vmatpush1.xpose.msra.mxu0 0.0
        %746 = vmatprep.subr.mxu0 0.0
        %747 = vmatpush1.xpose.msra.mxu0 0.0
        %748 = vmatprep.subr.mxu0 0.0
        %749 = vmatpush1.xpose.msra.mxu0 0.0
        %750 = vmatprep.subr.mxu0 0.0
        %751 = vmatpush1.xpose.msra.mxu0 0.0
        %752 = vmatprep.subr.mxu0 0.0
        %753 = vmatpush1.xpose.msra.mxu0 0.0
        %754 = vmatprep.subr.mxu0 0.0
        %755 = vmatpush1.xpose.msra.mxu0 0.0
        %756 = vmatprep.subr.mxu0 0.0
        %757 = vmatpush1.xpose.msra.mxu0 0.0
        %758 = vmatprep.subr.mxu0 0.0
        %759 = vmatpush1.xpose.msra.mxu0 %v304
        %760 = vmatprep.subr.mxu0 0.0
        %761 = vmatpush2.xpose.msra.mxu0 0.0
        %762 = vmatprep.subr.mxu0 0.0
        %763 = vmatpush2.xpose.msra.mxu0 0.0
        %764 = vmatprep.subr.mxu0 0.0
        %765 = vmatpush2.xpose.msra.mxu0 0.0
        %766 = vmatprep.subr.mxu0 0.0
        %767 = vmatpush2.xpose.msra.mxu0 0.0
        %768 = vmatprep.subr.mxu0 0.0
        %769 = vmatpush2.xpose.msra.mxu0 0.0
        %770 = vmatprep.subr.mxu0 0.0
        %771 = vmatpush2.xpose.msra.mxu0 0.0
        %772 = vmatprep.subr.mxu0 0.0
        %773 = vmatpush2.xpose.msra.mxu0 0.0
        %774 = vmatprep.subr.mxu0 0.0
        %775 = vmatpush2.xpose.msra.mxu0 0.0
        %776 = vmatprep.subr.mxu0 0.0
        %777 = vmatpush2.xpose.msra.mxu0 0.0
        %778 = vmatprep.subr.mxu0 0.0
        %779 = vmatpush2.xpose.msra.mxu0 0.0
        %780 = vmatprep.subr.mxu0 0.0
        %781 = vmatpush2.xpose.msra.mxu0 0.0
        %782 = vmatprep.subr.mxu0 0.0
        %783 = vmatpush2.xpose.msra.mxu0 0.0
        %784 = vmatprep.subr.mxu0 0.0
        %785 = vmatpush2.xpose.msra.mxu0 0.0
        %786 = vmatprep.subr.mxu0 0.0
        %787 = vmatpush2.xpose.msra.mxu0 0.0
        %788 = vmatprep.subr.mxu0 0.0
        %789 = vmatpush2.xpose.msra.mxu0 0.0
        %790 = vmatprep.subr.mxu0 0.0
        %791 = vmatpush2.xpose.msra.mxu0 0.0
        %792 = vmatprep.mubr.f32.mxu0 0.0
        %793 = vmatmul.mubr.f32.gmra.mxu0 %v434
        %v794 = vpop.f32.mrf.mxu0
        %v795 = vadd.f32 0.0, %v794
        %v796 = vpop.f32.mrf.mxu0
        %797 = vdwg.mxu0
        %798 = vmatprep.subr.mxu0 0.0
        %799 = vmatpush1.xpose.msra.mxu0 0.0
        %800 = vmatprep.subr.mxu0 0.0
        %801 = vmatpush1.xpose.msra.mxu0 0.0
        %802 = vmatprep.subr.mxu0 0.0
        %803 = vmatpush1.xpose.msra.mxu0 0.0
        %804 = vmatprep.subr.mxu0 0.0
        %805 = vmatpush1.xpose.msra.mxu0 0.0
        %806 = vmatprep.subr.mxu0 0.0
        %807 = vmatpush1.xpose.msra.mxu0 0.0
        %808 = vmatprep.subr.mxu0 0.0
        %809 = vmatpush1.xpose.msra.mxu0 0.0
        %810 = vmatprep.subr.mxu0 0.0
        %811 = vmatpush1.xpose.msra.mxu0 0.0
        %812 = vmatprep.subr.mxu0 0.0
        %813 = vmatpush1.xpose.msra.mxu0 0.0
        %814 = vmatprep.subr.mxu0 0.0
        %815 = vmatpush1.xpose.msra.mxu0 0.0
        %816 = vmatprep.subr.mxu0 0.0
        %817 = vmatpush1.xpose.msra.mxu0 0.0
        %818 = vmatprep.subr.mxu0 0.0
        %819 = vmatpush1.xpose.msra.mxu0 0.0
        %820 = vmatprep.subr.mxu0 0.0
        %821 = vmatpush1.xpose.msra.mxu0 0.0
        %822 = vmatprep.subr.mxu0 0.0
        %823 = vmatpush1.xpose.msra.mxu0 0.0
        %824 = vmatprep.subr.mxu0 0.0
        %825 = vmatpush1.xpose.msra.mxu0 0.0
        %826 = vmatprep.subr.mxu0 0.0
        %827 = vmatpush1.xpose.msra.mxu0 0.0
        %828 = vmatprep.subr.mxu0 0.0
        %829 = vmatpush1.xpose.msra.mxu0 %v305
        %830 = vmatprep.subr.mxu0 0.0
        %831 = vmatpush2.xpose.msra.mxu0 0.0
        %832 = vmatprep.subr.mxu0 0.0
        %833 = vmatpush2.xpose.msra.mxu0 0.0
        %834 = vmatprep.subr.mxu0 0.0
        %835 = vmatpush2.xpose.msra.mxu0 0.0
        %836 = vmatprep.subr.mxu0 0.0
        %837 = vmatpush2.xpose.msra.mxu0 0.0
        %838 = vmatprep.subr.mxu0 0.0
        %839 = vmatpush2.xpose.msra.mxu0 0.0
        %840 = vmatprep.subr.mxu0 0.0
        %841 = vmatpush2.xpose.msra.mxu0 0.0
        %842 = vmatprep.subr.mxu0 0.0
        %843 = vmatpush2.xpose.msra.mxu0 0.0
        %844 = vmatprep.subr.mxu0 0.0
        %845 = vmatpush2.xpose.msra.mxu0 0.0
        %846 = vmatprep.subr.mxu0 0.0
        %847 = vmatpush2.xpose.msra.mxu0 0.0
        %848 = vmatprep.subr.mxu0 0.0
        %849 = vmatpush2.xpose.msra.mxu0 0.0
        %850 = vmatprep.subr.mxu0 0.0
        %851 = vmatpush2.xpose.msra.mxu0 0.0
        %852 = vmatprep.subr.mxu0 0.0
        %853 = vmatpush2.xpose.msra.mxu0 0.0
        %854 = vmatprep.subr.mxu0 0.0
        %855 = vmatpush2.xpose.msra.mxu0 0.0
        %856 = vmatprep.subr.mxu0 0.0
        %857 = vmatpush2.xpose.msra.mxu0 0.0
        %858 = vmatprep.subr.mxu0 0.0
        %859 = vmatpush2.xpose.msra.mxu0 0.0
        %860 = vmatprep.subr.mxu0 0.0
        %861 = vmatpush2.xpose.msra.mxu0 0.0
        %862 = vmatprep.mubr.f32.mxu0 0.0
        %863 = vmatmul.mubr.f32.gmra.mxu0 %v437
        %v864 = vpop.f32.mrf.mxu0
        %v865 = vadd.f32 0.0, %v864
        %v866 = vpop.f32.mrf.mxu0
        %867 = vdwg.mxu0
        %868 = vmatprep.subr.mxu0 0.0
        %869 = vmatpush1.xpose.msra.mxu0 0.0
        %870 = vmatprep.subr.mxu0 0.0
        %871 = vmatpush1.xpose.msra.mxu0 0.0
        %872 = vmatprep.subr.mxu0 0.0
        %873 = vmatpush1.xpose.msra.mxu0 0.0
        %874 = vmatprep.subr.mxu0 0.0
        %875 = vmatpush1.xpose.msra.mxu0 0.0
        %876 = vmatprep.subr.mxu0 0.0
        %877 = vmatpush1.xpose.msra.mxu0 0.0
        %878 = vmatprep.subr.mxu0 0.0
        %879 = vmatpush1.xpose.msra.mxu0 0.0
        %880 = vmatprep.subr.mxu0 0.0
        %881 = vmatpush1.xpose.msra.mxu0 0.0
        %882 = vmatprep.subr.mxu0 0.0
        %883 = vmatpush1.xpose.msra.mxu0 0.0
        %884 = vmatprep.subr.mxu0 0.0
        %885 = vmatpush1.xpose.msra.mxu0 0.0
        %886 = vmatprep.subr.mxu0 0.0
        %887 = vmatpush1.xpose.msra.mxu0 0.0
        %888 = vmatprep.subr.mxu0 0.0
        %889 = vmatpush1.xpose.msra.mxu0 0.0
        %890 = vmatprep.subr.mxu0 0.0
        %891 = vmatpush1.xpose.msra.mxu0 0.0
        %892 = vmatprep.subr.mxu0 0.0
        %893 = vmatpush1.xpose.msra.mxu0 0.0
        %894 = vmatprep.subr.mxu0 0.0
        %895 = vmatpush1.xpose.msra.mxu0 0.0
        %896 = vmatprep.subr.mxu0 0.0
        %897 = vmatpush1.xpose.msra.mxu0 0.0
        %898 = vmatprep.subr.mxu0 0.0
        %899 = vmatpush1.xpose.msra.mxu0 %v306
        %900 = vmatprep.subr.mxu0 0.0
        %901 = vmatpush2.xpose.msra.mxu0 0.0
        %902 = vmatprep.subr.mxu0 0.0
        %903 = vmatpush2.xpose.msra.mxu0 0.0
        %904 = vmatprep.subr.mxu0 0.0
        %905 = vmatpush2.xpose.msra.mxu0 0.0
        %906 = vmatprep.subr.mxu0 0.0
        %907 = vmatpush2.xpose.msra.mxu0 0.0
        %908 = vmatprep.subr.mxu0 0.0
        %909 = vmatpush2.xpose.msra.mxu0 0.0
        %910 = vmatprep.subr.mxu0 0.0
        %911 = vmatpush2.xpose.msra.mxu0 0.0
        %912 = vmatprep.subr.mxu0 0.0
        %913 = vmatpush2.xpose.msra.mxu0 0.0
        %914 = vmatprep.subr.mxu0 0.0
        %915 = vmatpush2.xpose.msra.mxu0 0.0
        %916 = vmatprep.subr.mxu0 0.0
        %917 = vmatpush2.xpose.msra.mxu0 0.0
        %918 = vmatprep.subr.mxu0 0.0
        %919 = vmatpush2.xpose.msra.mxu0 0.0
        %920 = vmatprep.subr.mxu0 0.0
        %921 = vmatpush2.xpose.msra.mxu0 0.0
        %922 = vmatprep.subr.mxu0 0.0
        %923 = vmatpush2.xpose.msra.mxu0 0.0
        %924 = vmatprep.subr.mxu0 0.0
        %925 = vmatpush2.xpose.msra.mxu0 0.0
        %926 = vmatprep.subr.mxu0 0.0
        %927 = vmatpush2.xpose.msra.mxu0 0.0
        %928 = vmatprep.subr.mxu0 0.0
        %929 = vmatpush2.xpose.msra.mxu0 0.0
        %930 = vmatprep.subr.mxu0 0.0
        %931 = vmatpush2.xpose.msra.mxu0 0.0
        %932 = vmatprep.mubr.f32.mxu0 0.0
        %933 = vmatmul.mubr.f32.gmra.mxu0 %v442
        %v934 = vpop.f32.mrf.mxu0
        %v935 = vadd.f32 0.0, %v934
        %v936 = vpop.f32.mrf.mxu0
        %937 = vdwg.mxu0
        %938 = vmatprep.subr.mxu0 0.0
        %939 = vmatpush1.xpose.msra.mxu0 0.0
        %940 = vmatprep.subr.mxu0 0.0
        %941 = vmatpush1.xpose.msra.mxu0 0.0
        %942 = vmatprep.subr.mxu0 0.0
        %943 = vmatpush1.xpose.msra.mxu0 0.0
        %944 = vmatprep.subr.mxu0 0.0
        %945 = vmatpush1.xpose.msra.mxu0 0.0
        %946 = vmatprep.subr.mxu0 0.0
        %947 = vmatpush1.xpose.msra.mxu0 0.0
        %948 = vmatprep.subr.mxu0 0.0
        %949 = vmatpush1.xpose.msra.mxu0 0.0
        %950 = vmatprep.subr.mxu0 0.0
        %951 = vmatpush1.xpose.msra.mxu0 0.0
        %952 = vmatprep.subr.mxu0 0.0
        %953 = vmatpush1.xpose.msra.mxu0 0.0
        %954 = vmatprep.subr.mxu0 0.0
        %955 = vmatpush1.xpose.msra.mxu0 0.0
        %956 = vmatprep.subr.mxu0 0.0
        %957 = vmatpush1.xpose.msra.mxu0 0.0
        %958 = vmatprep.subr.mxu0 0.0
        %959 = vmatpush1.xpose.msra.mxu0 0.0
        %960 = vmatprep.subr.mxu0 0.0
        %961 = vmatpush1.xpose.msra.mxu0 0.0
        %962 = vmatprep.subr.mxu0 0.0
        %963 = vmatpush1.xpose.msra.mxu0 0.0
        %964 = vmatprep.subr.mxu0 0.0
        %965 = vmatpush1.xpose.msra.mxu0 0.0
        %966 = vmatprep.subr.mxu0 0.0
        %967 = vmatpush1.xpose.msra.mxu0 0.0
        %968 = vmatprep.subr.mxu0 0.0
        %969 = vmatpush1.xpose.msra.mxu0 %v307
        %970 = vmatprep.subr.mxu0 0.0
        %971 = vmatpush2.xpose.msra.mxu0 0.0
        %972 = vmatprep.subr.mxu0 0.0
        %973 = vmatpush2.xpose.msra.mxu0 0.0
        %974 = vmatprep.subr.mxu0 0.0
        %975 = vmatpush2.xpose.msra.mxu0 0.0
        %976 = vmatprep.subr.mxu0 0.0
        %977 = vmatpush2.xpose.msra.mxu0 0.0
        %978 = vmatprep.subr.mxu0 0.0
        %979 = vmatpush2.xpose.msra.mxu0 0.0
        %980 = vmatprep.subr.mxu0 0.0
        %981 = vmatpush2.xpose.msra.mxu0 0.0
        %982 = vmatprep.subr.mxu0 0.0
        %983 = vmatpush2.xpose.msra.mxu0 0.0
        %984 = vmatprep.subr.mxu0 0.0
        %985 = vmatpush2.xpose.msra.mxu0 0.0
        %986 = vmatprep.subr.mxu0 0.0
        %987 = vmatpush2.xpose.msra.mxu0 0.0
        %988 = vmatprep.subr.mxu0 0.0
        %989 = vmatpush2.xpose.msra.mxu0 0.0
        %990 = vmatprep.subr.mxu0 0.0
        %991 = vmatpush2.xpose.msra.mxu0 0.0
        %992 = vmatprep.subr.mxu0 0.0
        %993 = vmatpush2.xpose.msra.mxu0 0.0
        %994 = vmatprep.subr.mxu0 0.0
        %995 = vmatpush2.xpose.msra.mxu0 0.0
        %996 = vmatprep.subr.mxu0 0.0
        %997 = vmatpush2.xpose.msra.mxu0 0.0
        %998 = vmatprep.subr.mxu0 0.0
        %999 = vmatpush2.xpose.msra.mxu0 0.0
        %1000 = vmatprep.subr.mxu0 0.0
        %1001 = vmatpush2.xpose.msra.mxu0 0.0
        %1002 = vmatprep.mubr.f32.mxu0 0.0
        %1003 = vmatmul.mubr.f32.gmra.mxu0 %v445
        %v1004 = vpop.f32.mrf.mxu0
        %v1005 = vadd.f32 0.0, %v1004
        %v1006 = vpop.f32.mrf.mxu0
        %1007 = vdwg.mxu0
        %vm1008 = vcmask 64512
        %v1009 = vsel %vm1008, %v515, -inf
        %1010 = vmax.xlane.f32.xlu0 %v1009
        %v1011 = vpop.xlane.xlu0 %1010
        %v1012 = vsel %vm1008, %v585, -inf
        %1013 = vmax.xlane.f32.xlu0 %v1012
        %v1014 = vpop.xlane.xlu0 %1013
        %v1015 = vsel %vm1008, %v655, -inf
        %1016 = vmax.xlane.f32.xlu0 %v1015
        %v1017 = vpop.xlane.xlu0 %1016
        %v1018 = vsel %vm1008, %v725, -inf
        %1019 = vmax.xlane.f32.xlu0 %v1018
        %v1020 = vpop.xlane.xlu0 %1019
        %v1021 = vsel %vm1008, %v795, -inf
        %1022 = vmax.xlane.f32.xlu0 %v1021
        %v1023 = vpop.xlane.xlu0 %1022
        %v1024 = vsel %vm1008, %v865, -inf
        %1025 = vmax.xlane.f32.xlu0 %v1024
        %v1026 = vpop.xlane.xlu0 %1025
        %v1027 = vsel %vm1008, %v935, -inf
        %1028 = vmax.xlane.f32.xlu0 %v1027
        %v1029 = vpop.xlane.xlu0 %1028
        %v1030 = vsel %vm1008, %v1005, -inf
        %1031 = vmax.xlane.f32.xlu0 %v1030
        %v1032 = vpop.xlane.xlu0 %1031
        %v1033 = vsub.f32 %v515, %v1011
        %v1034 = vsub.f32 %v585, %v1014
        %v1035 = vsub.f32 %v655, %v1017
        %v1036 = vsub.f32 %v725, %v1020
        %v1037 = vsub.f32 %v795, %v1023
        %v1038 = vsub.f32 %v865, %v1026
        %v1039 = vsub.f32 %v935, %v1029
        %v1040 = vsub.f32 %v1005, %v1032
        %v1041 = vmul.f32 %v1033, 1.442695
        %v1042 = vpow.pop %v1041
        %v1043 = vmul.f32 %v1034, 1.442695
        %v1044 = vpow.pop %v1043
        %v1045 = vmul.f32 %v1035, 1.442695
        %v1046 = vpow.pop %v1045
        %v1047 = vmul.f32 %v1036, 1.442695
        %v1048 = vpow.pop %v1047
        %v1049 = vmul.f32 %v1037, 1.442695
        %v1050 = vpow.pop %v1049
        %v1051 = vmul.f32 %v1038, 1.442695
        %v1052 = vpow.pop %v1051
        %v1053 = vmul.f32 %v1039, 1.442695
        %v1054 = vpow.pop %v1053
        %v1055 = vmul.f32 %v1040, 1.442695
        %v1056 = vpow.pop %v1055
        %v1057 = vsel %vm1008, %v1042, 0.0
        %1058 = vadd.xlane.f32.xlu0 %v1057
        %v1059 = vpop.xlane.xlu0 %1058
        %v1060 = vsel %vm1008, %v1044, 0.0
        %1061 = vadd.xlane.f32.xlu0 %v1060
        %v1062 = vpop.xlane.xlu0 %1061
        %v1063 = vsel %vm1008, %v1046, 0.0
        %1064 = vadd.xlane.f32.xlu0 %v1063
        %v1065 = vpop.xlane.xlu0 %1064
        %v1066 = vsel %vm1008, %v1048, 0.0
        %1067 = vadd.xlane.f32.xlu0 %v1066
        %v1068 = vpop.xlane.xlu0 %1067
        %v1069 = vsel %vm1008, %v1050, 0.0
        %1070 = vadd.xlane.f32.xlu0 %v1069
        %v1071 = vpop.xlane.xlu0 %1070
        %v1072 = vsel %vm1008, %v1052, 0.0
        %1073 = vadd.xlane.f32.xlu0 %v1072
        %v1074 = vpop.xlane.xlu0 %1073
        %v1075 = vsel %vm1008, %v1054, 0.0
        %1076 = vadd.xlane.f32.xlu0 %v1075
        %v1077 = vpop.xlane.xlu0 %1076
        %v1078 = vsel %vm1008, %v1056, 0.0
        %1079 = vadd.xlane.f32.xlu0 %v1078
        %v1080 = vpop.xlane.xlu0 %1079
        %v1081 = vrcp.pop %v1059
        %v1082 = vmul.f32 %v1042, %v1081
        %v1083 = vrcp.pop %v1062
        %v1084 = vmul.f32 %v1044, %v1083
        %v1085 = vrcp.pop %v1065
        %v1086 = vmul.f32 %v1046, %v1085
        %v1087 = vrcp.pop %v1068
        %v1088 = vmul.f32 %v1048, %v1087
        %v1089 = vrcp.pop %v1071
        %v1090 = vmul.f32 %v1050, %v1089
        %v1091 = vrcp.pop %v1074
        %v1092 = vmul.f32 %v1052, %v1091
        %v1093 = vrcp.pop %v1077
        %v1094 = vmul.f32 %v1054, %v1093
        %v1095 = vrcp.pop %v1080
        %v1096 = vmul.f32 %v1056, %v1095
        %v1098 = vsel %vm1008, %v1082, 0
        %1100 = vmatprep.subr.mxu0 0.0
        %1101 = vmatpush1.msra.mxu0 0.0
        %1102 = vmatprep.subr.mxu0 0.0
        %1103 = vmatpush1.msra.mxu0 0.0
        %1104 = vmatprep.subr.mxu0 0.0
        %1105 = vmatpush1.msra.mxu0 0.0
        %1106 = vmatprep.subr.mxu0 0.0
        %1107 = vmatpush1.msra.mxu0 0.0
        %1108 = vmatprep.subr.mxu0 0.0
        %1109 = vmatpush1.msra.mxu0 0.0
        %1110 = vmatprep.subr.mxu0 0.0
        %1111 = vmatpush1.msra.mxu0 0.0
        %1112 = vmatprep.subr.mxu0 0.0
        %1113 = vmatpush1.msra.mxu0 0.0
        %1114 = vmatprep.subr.mxu0 0.0
        %1115 = vmatpush1.msra.mxu0 0.0
        %1116 = vmatprep.subr.mxu0 0.0
        %1117 = vmatpush1.msra.mxu0 0.0
        %1118 = vmatprep.subr.mxu0 0.0
        %1119 = vmatpush1.msra.mxu0 0.0
        %1120 = vmatprep.subr.mxu0 0.0
        %1121 = vmatpush1.msra.mxu0 0.0
        %1122 = vmatprep.subr.mxu0 0.0
        %1123 = vmatpush1.msra.mxu0 0.0
        %1124 = vmatprep.subr.mxu0 0.0
        %1125 = vmatpush1.msra.mxu0 0.0
        %1126 = vmatprep.subr.mxu0 0.0
        %1127 = vmatpush1.msra.mxu0 0.0
        %1128 = vmatprep.subr.mxu0 0.0
        %1129 = vmatpush1.msra.mxu0 0.0
        %1130 = vmatprep.subr.mxu0 0.0
        %1131 = vmatpush1.msra.mxu0 %v300
        %1132 = vmatprep.subr.mxu0 0.0
        %1133 = vmatpush2.msra.mxu0 0.0
        %1134 = vmatprep.subr.mxu0 0.0
        %1135 = vmatpush2.msra.mxu0 0.0
        %1136 = vmatprep.subr.mxu0 0.0
        %1137 = vmatpush2.msra.mxu0 0.0
        %1138 = vmatprep.subr.mxu0 0.0
        %1139 = vmatpush2.msra.mxu0 0.0
        %1140 = vmatprep.subr.mxu0 0.0
        %1141 = vmatpush2.msra.mxu0 0.0
        %1142 = vmatprep.subr.mxu0 0.0
        %1143 = vmatpush2.msra.mxu0 0.0
        %1144 = vmatprep.subr.mxu0 0.0
        %1145 = vmatpush2.msra.mxu0 0.0
        %1146 = vmatprep.subr.mxu0 0.0
        %1147 = vmatpush2.msra.mxu0 0.0
        %1148 = vmatprep.subr.mxu0 0.0
        %1149 = vmatpush2.msra.mxu0 0.0
        %1150 = vmatprep.subr.mxu0 0.0
        %1151 = vmatpush2.msra.mxu0 0.0
        %1152 = vmatprep.subr.mxu0 0.0
        %1153 = vmatpush2.msra.mxu0 0.0
        %1154 = vmatprep.subr.mxu0 0.0
        %1155 = vmatpush2.msra.mxu0 0.0
        %1156 = vmatprep.subr.mxu0 0.0
        %1157 = vmatpush2.msra.mxu0 0.0
        %1158 = vmatprep.subr.mxu0 0.0
        %1159 = vmatpush2.msra.mxu0 0.0
        %1160 = vmatprep.subr.mxu0 0.0
        %1161 = vmatpush2.msra.mxu0 0.0
        %1162 = vmatprep.subr.mxu0 0.0
        %1163 = vmatpush2.msra.mxu0 0.0
        %1164 = vmatprep.mubr.f32.mxu0 0.0
        %1165 = vmatmul.mubr.f32.gmra.mxu0 %v1098
        %v1166 = vpop.f32.mrf.mxu0
        %v1167 = vadd.f32 0.0, %v1166
        %v1168 = vpop.f32.mrf.mxu0
        %1169 = vdwg.mxu0
        %v1171 = vsel %vm1008, %v1084, 0
        %1173 = vmatprep.subr.mxu0 0.0
        %1174 = vmatpush1.msra.mxu0 0.0
        %1175 = vmatprep.subr.mxu0 0.0
        %1176 = vmatpush1.msra.mxu0 0.0
        %1177 = vmatprep.subr.mxu0 0.0
        %1178 = vmatpush1.msra.mxu0 0.0
        %1179 = vmatprep.subr.mxu0 0.0
        %1180 = vmatpush1.msra.mxu0 0.0
        %1181 = vmatprep.subr.mxu0 0.0
        %1182 = vmatpush1.msra.mxu0 0.0
        %1183 = vmatprep.subr.mxu0 0.0
        %1184 = vmatpush1.msra.mxu0 0.0
        %1185 = vmatprep.subr.mxu0 0.0
        %1186 = vmatpush1.msra.mxu0 0.0
        %1187 = vmatprep.subr.mxu0 0.0
        %1188 = vmatpush1.msra.mxu0 0.0
        %1189 = vmatprep.subr.mxu0 0.0
        %1190 = vmatpush1.msra.mxu0 0.0
        %1191 = vmatprep.subr.mxu0 0.0
        %1192 = vmatpush1.msra.mxu0 0.0
        %1193 = vmatprep.subr.mxu0 0.0
        %1194 = vmatpush1.msra.mxu0 0.0
        %1195 = vmatprep.subr.mxu0 0.0
        %1196 = vmatpush1.msra.mxu0 0.0
        %1197 = vmatprep.subr.mxu0 0.0
        %1198 = vmatpush1.msra.mxu0 0.0
        %1199 = vmatprep.subr.mxu0 0.0
        %1200 = vmatpush1.msra.mxu0 0.0
        %1201 = vmatprep.subr.mxu0 0.0
        %1202 = vmatpush1.msra.mxu0 0.0
        %1203 = vmatprep.subr.mxu0 0.0
        %1204 = vmatpush1.msra.mxu0 %v301
        %1205 = vmatprep.subr.mxu0 0.0
        %1206 = vmatpush2.msra.mxu0 0.0
        %1207 = vmatprep.subr.mxu0 0.0
        %1208 = vmatpush2.msra.mxu0 0.0
        %1209 = vmatprep.subr.mxu0 0.0
        %1210 = vmatpush2.msra.mxu0 0.0
        %1211 = vmatprep.subr.mxu0 0.0
        %1212 = vmatpush2.msra.mxu0 0.0
        %1213 = vmatprep.subr.mxu0 0.0
        %1214 = vmatpush2.msra.mxu0 0.0
        %1215 = vmatprep.subr.mxu0 0.0
        %1216 = vmatpush2.msra.mxu0 0.0
        %1217 = vmatprep.subr.mxu0 0.0
        %1218 = vmatpush2.msra.mxu0 0.0
        %1219 = vmatprep.subr.mxu0 0.0
        %1220 = vmatpush2.msra.mxu0 0.0
        %1221 = vmatprep.subr.mxu0 0.0
        %1222 = vmatpush2.msra.mxu0 0.0
        %1223 = vmatprep.subr.mxu0 0.0
        %1224 = vmatpush2.msra.mxu0 0.0
        %1225 = vmatprep.subr.mxu0 0.0
        %1226 = vmatpush2.msra.mxu0 0.0
        %1227 = vmatprep.subr.mxu0 0.0
        %1228 = vmatpush2.msra.mxu0 0.0
        %1229 = vmatprep.subr.mxu0 0.0
        %1230 = vmatpush2.msra.mxu0 0.0
        %1231 = vmatprep.subr.mxu0 0.0
        %1232 = vmatpush2.msra.mxu0 0.0
        %1233 = vmatprep.subr.mxu0 0.0
        %1234 = vmatpush2.msra.mxu0 0.0
        %1235 = vmatprep.subr.mxu0 0.0
        %1236 = vmatpush2.msra.mxu0 0.0
        %1237 = vmatprep.mubr.f32.mxu0 0.0
        %1238 = vmatmul.mubr.f32.gmra.mxu0 %v1171
        %v1239 = vpop.f32.mrf.mxu0
        %v1240 = vadd.f32 0.0, %v1239
        %v1241 = vpop.f32.mrf.mxu0
        %1242 = vdwg.mxu0
        %v1244 = vsel %vm1008, %v1086, 0
        %1246 = vmatprep.subr.mxu0 0.0
        %1247 = vmatpush1.msra.mxu0 0.0
        %1248 = vmatprep.subr.mxu0 0.0
        %1249 = vmatpush1.msra.mxu0 0.0
        %1250 = vmatprep.subr.mxu0 0.0
        %1251 = vmatpush1.msra.mxu0 0.0
        %1252 = vmatprep.subr.mxu0 0.0
        %1253 = vmatpush1.msra.mxu0 0.0
        %1254 = vmatprep.subr.mxu0 0.0
        %1255 = vmatpush1.msra.mxu0 0.0
        %1256 = vmatprep.subr.mxu0 0.0
        %1257 = vmatpush1.msra.mxu0 0.0
        %1258 = vmatprep.subr.mxu0 0.0
        %1259 = vmatpush1.msra.mxu0 0.0
        %1260 = vmatprep.subr.mxu0 0.0
        %1261 = vmatpush1.msra.mxu0 0.0
        %1262 = vmatprep.subr.mxu0 0.0
        %1263 = vmatpush1.msra.mxu0 0.0
        %1264 = vmatprep.subr.mxu0 0.0
        %1265 = vmatpush1.msra.mxu0 0.0
        %1266 = vmatprep.subr.mxu0 0.0
        %1267 = vmatpush1.msra.mxu0 0.0
        %1268 = vmatprep.subr.mxu0 0.0
        %1269 = vmatpush1.msra.mxu0 0.0
        %1270 = vmatprep.subr.mxu0 0.0
        %1271 = vmatpush1.msra.mxu0 0.0
        %1272 = vmatprep.subr.mxu0 0.0
        %1273 = vmatpush1.msra.mxu0 0.0
        %1274 = vmatprep.subr.mxu0 0.0
        %1275 = vmatpush1.msra.mxu0 0.0
        %1276 = vmatprep.subr.mxu0 0.0
        %1277 = vmatpush1.msra.mxu0 %v302
        %1278 = vmatprep.subr.mxu0 0.0
        %1279 = vmatpush2.msra.mxu0 0.0
        %1280 = vmatprep.subr.mxu0 0.0
        %1281 = vmatpush2.msra.mxu0 0.0
        %1282 = vmatprep.subr.mxu0 0.0
        %1283 = vmatpush2.msra.mxu0 0.0
        %1284 = vmatprep.subr.mxu0 0.0
        %1285 = vmatpush2.msra.mxu0 0.0
        %1286 = vmatprep.subr.mxu0 0.0
        %1287 = vmatpush2.msra.mxu0 0.0
        %1288 = vmatprep.subr.mxu0 0.0
        %1289 = vmatpush2.msra.mxu0 0.0
        %1290 = vmatprep.subr.mxu0 0.0
        %1291 = vmatpush2.msra.mxu0 0.0
        %1292 = vmatprep.subr.mxu0 0.0
        %1293 = vmatpush2.msra.mxu0 0.0
        %1294 = vmatprep.subr.mxu0 0.0
        %1295 = vmatpush2.msra.mxu0 0.0
        %1296 = vmatprep.subr.mxu0 0.0
        %1297 = vmatpush2.msra.mxu0 0.0
        %1298 = vmatprep.subr.mxu0 0.0
        %1299 = vmatpush2.msra.mxu0 0.0
        %1300 = vmatprep.subr.mxu0 0.0
        %1301 = vmatpush2.msra.mxu0 0.0
        %1302 = vmatprep.subr.mxu0 0.0
        %1303 = vmatpush2.msra.mxu0 0.0
        %1304 = vmatprep.subr.mxu0 0.0
        %1305 = vmatpush2.msra.mxu0 0.0
        %1306 = vmatprep.subr.mxu0 0.0
        %1307 = vmatpush2.msra.mxu0 0.0
        %1308 = vmatprep.subr.mxu0 0.0
        %1309 = vmatpush2.msra.mxu0 0.0
        %1310 = vmatprep.mubr.f32.mxu0 0.0
        %1311 = vmatmul.mubr.f32.gmra.mxu0 %v1244
        %v1312 = vpop.f32.mrf.mxu0
        %v1313 = vadd.f32 0.0, %v1312
        %v1314 = vpop.f32.mrf.mxu0
        %1315 = vdwg.mxu0
        %v1317 = vsel %vm1008, %v1088, 0
        %1319 = vmatprep.subr.mxu0 0.0
        %1320 = vmatpush1.msra.mxu0 0.0
        %1321 = vmatprep.subr.mxu0 0.0
        %1322 = vmatpush1.msra.mxu0 0.0
        %1323 = vmatprep.subr.mxu0 0.0
        %1324 = vmatpush1.msra.mxu0 0.0
        %1325 = vmatprep.subr.mxu0 0.0
        %1326 = vmatpush1.msra.mxu0 0.0
        %1327 = vmatprep.subr.mxu0 0.0
        %1328 = vmatpush1.msra.mxu0 0.0
        %1329 = vmatprep.subr.mxu0 0.0
        %1330 = vmatpush1.msra.mxu0 0.0
        %1331 = vmatprep.subr.mxu0 0.0
        %1332 = vmatpush1.msra.mxu0 0.0
        %1333 = vmatprep.subr.mxu0 0.0
        %1334 = vmatpush1.msra.mxu0 0.0
        %1335 = vmatprep.subr.mxu0 0.0
        %1336 = vmatpush1.msra.mxu0 0.0
        %1337 = vmatprep.subr.mxu0 0.0
        %1338 = vmatpush1.msra.mxu0 0.0
        %1339 = vmatprep.subr.mxu0 0.0
        %1340 = vmatpush1.msra.mxu0 0.0
        %1341 = vmatprep.subr.mxu0 0.0
        %1342 = vmatpush1.msra.mxu0 0.0
        %1343 = vmatprep.subr.mxu0 0.0
        %1344 = vmatpush1.msra.mxu0 0.0
        %1345 = vmatprep.subr.mxu0 0.0
        %1346 = vmatpush1.msra.mxu0 0.0
        %1347 = vmatprep.subr.mxu0 0.0
        %1348 = vmatpush1.msra.mxu0 0.0
        %1349 = vmatprep.subr.mxu0 0.0
        %1350 = vmatpush1.msra.mxu0 %v303
        %1351 = vmatprep.subr.mxu0 0.0
        %1352 = vmatpush2.msra.mxu0 0.0
        %1353 = vmatprep.subr.mxu0 0.0
        %1354 = vmatpush2.msra.mxu0 0.0
        %1355 = vmatprep.subr.mxu0 0.0
        %1356 = vmatpush2.msra.mxu0 0.0
        %1357 = vmatprep.subr.mxu0 0.0
        %1358 = vmatpush2.msra.mxu0 0.0
        %1359 = vmatprep.subr.mxu0 0.0
        %1360 = vmatpush2.msra.mxu0 0.0
        %1361 = vmatprep.subr.mxu0 0.0
        %1362 = vmatpush2.msra.mxu0 0.0
        %1363 = vmatprep.subr.mxu0 0.0
        %1364 = vmatpush2.msra.mxu0 0.0
        %1365 = vmatprep.subr.mxu0 0.0
        %1366 = vmatpush2.msra.mxu0 0.0
        %1367 = vmatprep.subr.mxu0 0.0
        %1368 = vmatpush2.msra.mxu0 0.0
        %1369 = vmatprep.subr.mxu0 0.0
        %1370 = vmatpush2.msra.mxu0 0.0
        %1371 = vmatprep.subr.mxu0 0.0
        %1372 = vmatpush2.msra.mxu0 0.0
        %1373 = vmatprep.subr.mxu0 0.0
        %1374 = vmatpush2.msra.mxu0 0.0
        %1375 = vmatprep.subr.mxu0 0.0
        %1376 = vmatpush2.msra.mxu0 0.0
        %1377 = vmatprep.subr.mxu0 0.0
        %1378 = vmatpush2.msra.mxu0 0.0
        %1379 = vmatprep.subr.mxu0 0.0
        %1380 = vmatpush2.msra.mxu0 0.0
        %1381 = vmatprep.subr.mxu0 0.0
        %1382 = vmatpush2.msra.mxu0 0.0
        %1383 = vmatprep.mubr.f32.mxu0 0.0
        %1384 = vmatmul.mubr.f32.gmra.mxu0 %v1317
        %v1385 = vpop.f32.mrf.mxu0
        %v1386 = vadd.f32 0.0, %v1385
        %v1387 = vpop.f32.mrf.mxu0
        %1388 = vdwg.mxu0
        %v1390 = vsel %vm1008, %v1090, 0
        %1392 = vmatprep.subr.mxu0 0.0
        %1393 = vmatpush1.msra.mxu0 0.0
        %1394 = vmatprep.subr.mxu0 0.0
        %1395 = vmatpush1.msra.mxu0 0.0
        %1396 = vmatprep.subr.mxu0 0.0
        %1397 = vmatpush1.msra.mxu0 0.0
        %1398 = vmatprep.subr.mxu0 0.0
        %1399 = vmatpush1.msra.mxu0 0.0
        %1400 = vmatprep.subr.mxu0 0.0
        %1401 = vmatpush1.msra.mxu0 0.0
        %1402 = vmatprep.subr.mxu0 0.0
        %1403 = vmatpush1.msra.mxu0 0.0
        %1404 = vmatprep.subr.mxu0 0.0
        %1405 = vmatpush1.msra.mxu0 0.0
        %1406 = vmatprep.subr.mxu0 0.0
        %1407 = vmatpush1.msra.mxu0 0.0
        %1408 = vmatprep.subr.mxu0 0.0
        %1409 = vmatpush1.msra.mxu0 0.0
        %1410 = vmatprep.subr.mxu0 0.0
        %1411 = vmatpush1.msra.mxu0 0.0
        %1412 = vmatprep.subr.mxu0 0.0
        %1413 = vmatpush1.msra.mxu0 0.0
        %1414 = vmatprep.subr.mxu0 0.0
        %1415 = vmatpush1.msra.mxu0 0.0
        %1416 = vmatprep.subr.mxu0 0.0
        %1417 = vmatpush1.msra.mxu0 0.0
        %1418 = vmatprep.subr.mxu0 0.0
        %1419 = vmatpush1.msra.mxu0 0.0
        %1420 = vmatprep.subr.mxu0 0.0
        %1421 = vmatpush1.msra.mxu0 0.0
        %1422 = vmatprep.subr.mxu0 0.0
        %1423 = vmatpush1.msra.mxu0 %v304
        %1424 = vmatprep.subr.mxu0 0.0
        %1425 = vmatpush2.msra.mxu0 0.0
        %1426 = vmatprep.subr.mxu0 0.0
        %1427 = vmatpush2.msra.mxu0 0.0
        %1428 = vmatprep.subr.mxu0 0.0
        %1429 = vmatpush2.msra.mxu0 0.0
        %1430 = vmatprep.subr.mxu0 0.0
        %1431 = vmatpush2.msra.mxu0 0.0
        %1432 = vmatprep.subr.mxu0 0.0
        %1433 = vmatpush2.msra.mxu0 0.0
        %1434 = vmatprep.subr.mxu0 0.0
        %1435 = vmatpush2.msra.mxu0 0.0
        %1436 = vmatprep.subr.mxu0 0.0
        %1437 = vmatpush2.msra.mxu0 0.0
        %1438 = vmatprep.subr.mxu0 0.0
        %1439 = vmatpush2.msra.mxu0 0.0
        %1440 = vmatprep.subr.mxu0 0.0
        %1441 = vmatpush2.msra.mxu0 0.0
        %1442 = vmatprep.subr.mxu0 0.0
        %1443 = vmatpush2.msra.mxu0 0.0
        %1444 = vmatprep.subr.mxu0 0.0
        %1445 = vmatpush2.msra.mxu0 0.0
        %1446 = vmatprep.subr.mxu0 0.0
        %1447 = vmatpush2.msra.mxu0 0.0
        %1448 = vmatprep.subr.mxu0 0.0
        %1449 = vmatpush2.msra.mxu0 0.0
        %1450 = vmatprep.subr.mxu0 0.0
        %1451 = vmatpush2.msra.mxu0 0.0
        %1452 = vmatprep.subr.mxu0 0.0
        %1453 = vmatpush2.msra.mxu0 0.0
        %1454 = vmatprep.subr.mxu0 0.0
        %1455 = vmatpush2.msra.mxu0 0.0
        %1456 = vmatprep.mubr.f32.mxu0 0.0
        %1457 = vmatmul.mubr.f32.gmra.mxu0 %v1390
        %v1458 = vpop.f32.mrf.mxu0
        %v1459 = vadd.f32 0.0, %v1458
        %v1460 = vpop.f32.mrf.mxu0
        %1461 = vdwg.mxu0
        %v1463 = vsel %vm1008, %v1092, 0
        %1465 = vmatprep.subr.mxu0 0.0
        %1466 = vmatpush1.msra.mxu0 0.0
        %1467 = vmatprep.subr.mxu0 0.0
        %1468 = vmatpush1.msra.mxu0 0.0
        %1469 = vmatprep.subr.mxu0 0.0
        %1470 = vmatpush1.msra.mxu0 0.0
        %1471 = vmatprep.subr.mxu0 0.0
        %1472 = vmatpush1.msra.mxu0 0.0
        %1473 = vmatprep.subr.mxu0 0.0
        %1474 = vmatpush1.msra.mxu0 0.0
        %1475 = vmatprep.subr.mxu0 0.0
        %1476 = vmatpush1.msra.mxu0 0.0
        %1477 = vmatprep.subr.mxu0 0.0
        %1478 = vmatpush1.msra.mxu0 0.0
        %1479 = vmatprep.subr.mxu0 0.0
        %1480 = vmatpush1.msra.mxu0 0.0
        %1481 = vmatprep.subr.mxu0 0.0
        %1482 = vmatpush1.msra.mxu0 0.0
        %1483 = vmatprep.subr.mxu0 0.0
        %1484 = vmatpush1.msra.mxu0 0.0
        %1485 = vmatprep.subr.mxu0 0.0
        %1486 = vmatpush1.msra.mxu0 0.0
        %1487 = vmatprep.subr.mxu0 0.0
        %1488 = vmatpush1.msra.mxu0 0.0
        %1489 = vmatprep.subr.mxu0 0.0
        %1490 = vmatpush1.msra.mxu0 0.0
        %1491 = vmatprep.subr.mxu0 0.0
        %1492 = vmatpush1.msra.mxu0 0.0
        %1493 = vmatprep.subr.mxu0 0.0
        %1494 = vmatpush1.msra.mxu0 0.0
        %1495 = vmatprep.subr.mxu0 0.0
        %1496 = vmatpush1.msra.mxu0 %v305
        %1497 = vmatprep.subr.mxu0 0.0
        %1498 = vmatpush2.msra.mxu0 0.0
        %1499 = vmatprep.subr.mxu0 0.0
        %1500 = vmatpush2.msra.mxu0 0.0
        %1501 = vmatprep.subr.mxu0 0.0
        %1502 = vmatpush2.msra.mxu0 0.0
        %1503 = vmatprep.subr.mxu0 0.0
        %1504 = vmatpush2.msra.mxu0 0.0
        %1505 = vmatprep.subr.mxu0 0.0
        %1506 = vmatpush2.msra.mxu0 0.0
        %1507 = vmatprep.subr.mxu0 0.0
        %1508 = vmatpush2.msra.mxu0 0.0
        %1509 = vmatprep.subr.mxu0 0.0
        %1510 = vmatpush2.msra.mxu0 0.0
        %1511 = vmatprep.subr.mxu0 0.0
        %1512 = vmatpush2.msra.mxu0 0.0
        %1513 = vmatprep.subr.mxu0 0.0
        %1514 = vmatpush2.msra.mxu0 0.0
        %1515 = vmatprep.subr.mxu0 0.0
        %1516 = vmatpush2.msra.mxu0 0.0
        %1517 = vmatprep.subr.mxu0 0.0
        %1518 = vmatpush2.msra.mxu0 0.0
        %1519 = vmatprep.subr.mxu0 0.0
        %1520 = vmatpush2.msra.mxu0 0.0
        %1521 = vmatprep.subr.mxu0 0.0
        %1522 = vmatpush2.msra.mxu0 0.0
        %1523 = vmatprep.subr.mxu0 0.0
        %1524 = vmatpush2.msra.mxu0 0.0
        %1525 = vmatprep.subr.mxu0 0.0
        %1526 = vmatpush2.msra.mxu0 0.0
        %1527 = vmatprep.subr.mxu0 0.0
        %1528 = vmatpush2.msra.mxu0 0.0
        %1529 = vmatprep.mubr.f32.mxu0 0.0
        %1530 = vmatmul.mubr.f32.gmra.mxu0 %v1463
        %v1531 = vpop.f32.mrf.mxu0
        %v1532 = vadd.f32 0.0, %v1531
        %v1533 = vpop.f32.mrf.mxu0
        %1534 = vdwg.mxu0
        %v1536 = vsel %vm1008, %v1094, 0
        %1538 = vmatprep.subr.mxu0 0.0
        %1539 = vmatpush1.msra.mxu0 0.0
        %1540 = vmatprep.subr.mxu0 0.0
        %1541 = vmatpush1.msra.mxu0 0.0
        %1542 = vmatprep.subr.mxu0 0.0
        %1543 = vmatpush1.msra.mxu0 0.0
        %1544 = vmatprep.subr.mxu0 0.0
        %1545 = vmatpush1.msra.mxu0 0.0
        %1546 = vmatprep.subr.mxu0 0.0
        %1547 = vmatpush1.msra.mxu0 0.0
        %1548 = vmatprep.subr.mxu0 0.0
        %1549 = vmatpush1.msra.mxu0 0.0
        %1550 = vmatprep.subr.mxu0 0.0
        %1551 = vmatpush1.msra.mxu0 0.0
        %1552 = vmatprep.subr.mxu0 0.0
        %1553 = vmatpush1.msra.mxu0 0.0
        %1554 = vmatprep.subr.mxu0 0.0
        %1555 = vmatpush1.msra.mxu0 0.0
        %1556 = vmatprep.subr.mxu0 0.0
        %1557 = vmatpush1.msra.mxu0 0.0
        %1558 = vmatprep.subr.mxu0 0.0
        %1559 = vmatpush1.msra.mxu0 0.0
        %1560 = vmatprep.subr.mxu0 0.0
        %1561 = vmatpush1.msra.mxu0 0.0
        %1562 = vmatprep.subr.mxu0 0.0
        %1563 = vmatpush1.msra.mxu0 0.0
        %1564 = vmatprep.subr.mxu0 0.0
        %1565 = vmatpush1.msra.mxu0 0.0
        %1566 = vmatprep.subr.mxu0 0.0
        %1567 = vmatpush1.msra.mxu0 0.0
        %1568 = vmatprep.subr.mxu0 0.0
        %1569 = vmatpush1.msra.mxu0 %v306
        %1570 = vmatprep.subr.mxu0 0.0
        %1571 = vmatpush2.msra.mxu0 0.0
        %1572 = vmatprep.subr.mxu0 0.0
        %1573 = vmatpush2.msra.mxu0 0.0
        %1574 = vmatprep.subr.mxu0 0.0
        %1575 = vmatpush2.msra.mxu0 0.0
        %1576 = vmatprep.subr.mxu0 0.0
        %1577 = vmatpush2.msra.mxu0 0.0
        %1578 = vmatprep.subr.mxu0 0.0
        %1579 = vmatpush2.msra.mxu0 0.0
        %1580 = vmatprep.subr.mxu0 0.0
        %1581 = vmatpush2.msra.mxu0 0.0
        %1582 = vmatprep.subr.mxu0 0.0
        %1583 = vmatpush2.msra.mxu0 0.0
        %1584 = vmatprep.subr.mxu0 0.0
        %1585 = vmatpush2.msra.mxu0 0.0
        %1586 = vmatprep.subr.mxu0 0.0
        %1587 = vmatpush2.msra.mxu0 0.0
        %1588 = vmatprep.subr.mxu0 0.0
        %1589 = vmatpush2.msra.mxu0 0.0
        %1590 = vmatprep.subr.mxu0 0.0
        %1591 = vmatpush2.msra.mxu0 0.0
        %1592 = vmatprep.subr.mxu0 0.0
        %1593 = vmatpush2.msra.mxu0 0.0
        %1594 = vmatprep.subr.mxu0 0.0
        %1595 = vmatpush2.msra.mxu0 0.0
        %1596 = vmatprep.subr.mxu0 0.0
        %1597 = vmatpush2.msra.mxu0 0.0
        %1598 = vmatprep.subr.mxu0 0.0
        %1599 = vmatpush2.msra.mxu0 0.0
        %1600 = vmatprep.subr.mxu0 0.0
        %1601 = vmatpush2.msra.mxu0 0.0
        %1602 = vmatprep.mubr.f32.mxu0 0.0
        %1603 = vmatmul.mubr.f32.gmra.mxu0 %v1536
        %v1604 = vpop.f32.mrf.mxu0
        %v1605 = vadd.f32 0.0, %v1604
        %v1606 = vpop.f32.mrf.mxu0
        %1607 = vdwg.mxu0
        %v1609 = vsel %vm1008, %v1096, 0
        %1611 = vmatprep.subr.mxu0 0.0
        %1612 = vmatpush1.msra.mxu0 0.0
        %1613 = vmatprep.subr.mxu0 0.0
        %1614 = vmatpush1.msra.mxu0 0.0
        %1615 = vmatprep.subr.mxu0 0.0
        %1616 = vmatpush1.msra.mxu0 0.0
        %1617 = vmatprep.subr.mxu0 0.0
        %1618 = vmatpush1.msra.mxu0 0.0
        %1619 = vmatprep.subr.mxu0 0.0
        %1620 = vmatpush1.msra.mxu0 0.0
        %1621 = vmatprep.subr.mxu0 0.0
        %1622 = vmatpush1.msra.mxu0 0.0
        %1623 = vmatprep.subr.mxu0 0.0
        %1624 = vmatpush1.msra.mxu0 0.0
        %1625 = vmatprep.subr.mxu0 0.0
        %1626 = vmatpush1.msra.mxu0 0.0
        %1627 = vmatprep.subr.mxu0 0.0
        %1628 = vmatpush1.msra.mxu0 0.0
        %1629 = vmatprep.subr.mxu0 0.0
        %1630 = vmatpush1.msra.mxu0 0.0
        %1631 = vmatprep.subr.mxu0 0.0
        %1632 = vmatpush1.msra.mxu0 0.0
        %1633 = vmatprep.subr.mxu0 0.0
        %1634 = vmatpush1.msra.mxu0 0.0
        %1635 = vmatprep.subr.mxu0 0.0
        %1636 = vmatpush1.msra.mxu0 0.0
        %1637 = vmatprep.subr.mxu0 0.0
        %1638 = vmatpush1.msra.mxu0 0.0
        %1639 = vmatprep.subr.mxu0 0.0
        %1640 = vmatpush1.msra.mxu0 0.0
        %1641 = vmatprep.subr.mxu0 0.0
        %1642 = vmatpush1.msra.mxu0 %v307
        %1643 = vmatprep.subr.mxu0 0.0
        %1644 = vmatpush2.msra.mxu0 0.0
        %1645 = vmatprep.subr.mxu0 0.0
        %1646 = vmatpush2.msra.mxu0 0.0
        %1647 = vmatprep.subr.mxu0 0.0
        %1648 = vmatpush2.msra.mxu0 0.0
        %1649 = vmatprep.subr.mxu0 0.0
        %1650 = vmatpush2.msra.mxu0 0.0
        %1651 = vmatprep.subr.mxu0 0.0
        %1652 = vmatpush2.msra.mxu0 0.0
        %1653 = vmatprep.subr.mxu0 0.0
        %1654 = vmatpush2.msra.mxu0 0.0
        %1655 = vmatprep.subr.mxu0 0.0
        %1656 = vmatpush2.msra.mxu0 0.0
        %1657 = vmatprep.subr.mxu0 0.0
        %1658 = vmatpush2.msra.mxu0 0.0
        %1659 = vmatprep.subr.mxu0 0.0
        %1660 = vmatpush2.msra.mxu0 0.0
        %1661 = vmatprep.subr.mxu0 0.0
        %1662 = vmatpush2.msra.mxu0 0.0
        %1663 = vmatprep.subr.mxu0 0.0
        %1664 = vmatpush2.msra.mxu0 0.0
        %1665 = vmatprep.subr.mxu0 0.0
        %1666 = vmatpush2.msra.mxu0 0.0
        %1667 = vmatprep.subr.mxu0 0.0
        %1668 = vmatpush2.msra.mxu0 0.0
        %1669 = vmatprep.subr.mxu0 0.0
        %1670 = vmatpush2.msra.mxu0 0.0
        %1671 = vmatprep.subr.mxu0 0.0
        %1672 = vmatpush2.msra.mxu0 0.0
        %1673 = vmatprep.subr.mxu0 0.0
        %1674 = vmatpush2.msra.mxu0 0.0
        %1675 = vmatprep.mubr.f32.mxu0 0.0
        %1676 = vmatmul.mubr.f32.gmra.mxu0 %v1609
        %v1677 = vpop.f32.mrf.mxu0
        %v1678 = vadd.f32 0.0, %v1677
        %v1679 = vpop.f32.mrf.mxu0
        %1680 = vdwg.mxu0
        %1681 = vst [vmem:[%s292] sm:$0xff] %v300
        %1682 = vst [vmem:[%s292 + $0x10] sm:$0xff] %v301
        %1683 = vst [vmem:[%s292 + $0x20] sm:$0xff] %v302
        %1684 = vst [vmem:[%s292 + $0x30] sm:$0xff] %v303
        %1685 = vst [vmem:[%s292 + $0x40] sm:$0xff] %v304
        %1686 = vst [vmem:[%s292 + $0x50] sm:$0xff] %v305
        %1687 = vst [vmem:[%s292 + $0x60] sm:$0xff] %v306
        %1688 = vst [vmem:[%s292 + $0x70] sm:$0xff] %v307
        %1689 = vst [vmem:[%s292 + $0x8] sm:$0xff] %v1167
        %1690 = vst [vmem:[%s292 + $0x18] sm:$0xff] %v1240
        %1691 = vst [vmem:[%s292 + $0x28] sm:$0xff] %v1313
        %1692 = vst [vmem:[%s292 + $0x38] sm:$0xff] %v1386
        %1693 = vst [vmem:[%s292 + $0x48] sm:$0xff] %v1459
        %1694 = vst [vmem:[%s292 + $0x58] sm:$0xff] %v1532
        %1695 = vst [vmem:[%s292 + $0x68] sm:$0xff] %v1605
        %1696 = vst [vmem:[%s292 + $0x78] sm:$0xff] %v1678
        %v1697 = vld [vmem:[%s3] sm:$0x3]
        %v1699 = vlaneseq
        %v1700 = vshrl.u32 %v1699, 7
        %v1701 = vsub.s32 0, %v1700
        %v1702 = vrot.slane %v1697, %v1701
        %v1704 = vmul.f32 %v300, %v1702
        %v1705 = vmul.f32 %v301, %v1702
        %v1706 = vmul.f32 %v302, %v1702
        %v1707 = vmul.f32 %v303, %v1702
        %v1708 = vmul.f32 %v304, %v1702
        %v1709 = vmul.f32 %v305, %v1702
        %v1710 = vmul.f32 %v306, %v1702
        %v1711 = vmul.f32 %v307, %v1702
        %1712 = vadd.xlane.f32.xlu0 %v1704
        %v1713 = vpop.xlane.xlu0 %1712
        %1714 = vadd.xlane.f32.xlu0 %v1705
        %v1715 = vpop.xlane.xlu0 %1714
        %1716 = vadd.xlane.f32.xlu0 %v1706
        %v1717 = vpop.xlane.xlu0 %1716
        %1718 = vadd.xlane.f32.xlu0 %v1707
        %v1719 = vpop.xlane.xlu0 %1718
        %1720 = vadd.xlane.f32.xlu0 %v1708
        %v1721 = vpop.xlane.xlu0 %1720
        %1722 = vadd.xlane.f32.xlu0 %v1709
        %v1723 = vpop.xlane.xlu0 %1722
        %1724 = vadd.xlane.f32.xlu0 %v1710
        %v1725 = vpop.xlane.xlu0 %1724
        %1726 = vadd.xlane.f32.xlu0 %v1711
        %v1727 = vpop.xlane.xlu0 %1726
        %v1728 = vrot.slane %v1697, 1
        %v1729 = vlaneseq
        %v1730 = vshrl.u32 %v1729, 7
        %v1731 = vsub.s32 0, %v1730
        %v1732 = vrot.slane %v1728, %v1731
        %v1734 = vmul.f32 %v1167, %v1732
        %v1735 = vmul.f32 %v1240, %v1732
        %v1736 = vmul.f32 %v1313, %v1732
        %v1737 = vmul.f32 %v1386, %v1732
        %v1738 = vmul.f32 %v1459, %v1732
        %v1739 = vmul.f32 %v1532, %v1732
        %v1740 = vmul.f32 %v1605, %v1732
        %v1741 = vmul.f32 %v1678, %v1732
        %1742 = vadd.xlane.f32.xlu0 %v1734
        %v1743 = vpop.xlane.xlu0 %1742
        %1744 = vadd.xlane.f32.xlu0 %v1735
        %v1745 = vpop.xlane.xlu0 %1744
        %1746 = vadd.xlane.f32.xlu0 %v1736
        %v1747 = vpop.xlane.xlu0 %1746
        %1748 = vadd.xlane.f32.xlu0 %v1737
        %v1749 = vpop.xlane.xlu0 %1748
        %1750 = vadd.xlane.f32.xlu0 %v1738
        %v1751 = vpop.xlane.xlu0 %1750
        %1752 = vadd.xlane.f32.xlu0 %v1739
        %v1753 = vpop.xlane.xlu0 %1752
        %1754 = vadd.xlane.f32.xlu0 %v1740
        %v1755 = vpop.xlane.xlu0 %1754
        %1756 = vadd.xlane.f32.xlu0 %v1741
        %v1757 = vpop.xlane.xlu0 %1756
        %v1758 = vadd.f32 %v1713, %v1743
        %v1759 = vadd.f32 %v1715, %v1745
        %v1760 = vadd.f32 %v1717, %v1747
        %v1761 = vadd.f32 %v1719, %v1749
        %v1762 = vadd.f32 %v1721, %v1751
        %v1763 = vadd.f32 %v1723, %v1753
        %v1764 = vadd.f32 %v1725, %v1755
        %v1765 = vadd.f32 %v1727, %v1757
        %s1766 = sld [smem:[#allocation2]]
        %v1767 = vstv %s1766
        %v1768 = vadd.f32 %v1758, %v1767
        %v1769 = vadd.f32 %v1759, %v1767
        %v1770 = vadd.f32 %v1760, %v1767
        %v1771 = vadd.f32 %v1761, %v1767
        %v1772 = vadd.f32 %v1762, %v1767
        %v1773 = vadd.f32 %v1763, %v1767
        %v1774 = vadd.f32 %v1764, %v1767
        %v1775 = vadd.f32 %v1765, %v1767
        %v1784 = vlaneseq
        %v1785 = vand.u32 %v1784, 127
        %v1786 = vlaneseq
        %v1787 = vshrl.u32 %v1786, 7
        %v1788 = vsub.s32 %v1785, %v1787
        %v1789 = vrot.slane %v1768, %v1788
        %v1790 = vlaneseq
        %v1791 = vshrl.u32 %v1790, 7
        %v1792 = vsub.s32 %v1785, %v1791
        %v1793 = vrot.slane %v1769, %v1792
        %v1794 = vlaneseq
        %v1795 = vshrl.u32 %v1794, 7
        %v1796 = vsub.s32 %v1785, %v1795
        %v1797 = vrot.slane %v1770, %v1796
        %v1798 = vlaneseq
        %v1799 = vshrl.u32 %v1798, 7
        %v1800 = vsub.s32 %v1785, %v1799
        %v1801 = vrot.slane %v1771, %v1800
        %v1802 = vlaneseq
        %v1803 = vshrl.u32 %v1802, 7
        %v1804 = vsub.s32 %v1785, %v1803
        %v1805 = vrot.slane %v1772, %v1804
        %v1806 = vlaneseq
        %v1807 = vshrl.u32 %v1806, 7
        %v1808 = vsub.s32 %v1785, %v1807
        %v1809 = vrot.slane %v1773, %v1808
        %v1810 = vlaneseq
        %v1811 = vshrl.u32 %v1810, 7
        %v1812 = vsub.s32 %v1785, %v1811
        %v1813 = vrot.slane %v1774, %v1812
        %v1814 = vlaneseq
        %v1815 = vshrl.u32 %v1814, 7
        %v1816 = vsub.s32 %v1785, %v1815
        %v1817 = vrot.slane %v1775, %v1816
        %vm1818 = vcmask 1041409
        %v1819 = vsel %vm1818, %v1793, %v1789
        %vm1820 = vcmask 1042434
        %v1821 = vsel %vm1820, %v1797, %v1819
        %vm1822 = vcmask 1043459
        %v1823 = vsel %vm1822, %v1801, %v1821
        %vm1824 = vcmask 1044484
        %v1825 = vsel %vm1824, %v1805, %v1823
        %vm1826 = vcmask 1045509
        %v1827 = vsel %vm1826, %v1809, %v1825
        %vm1828 = vcmask 1046534
        %v1829 = vsel %vm1828, %v1813, %v1827
        %vm1830 = vcmask 1047559
        %v1831 = vsel %vm1830, %v1817, %v1829
        %1833 = vst.msk [vmem:[%s297] sm:$0xff] %vm1008, %v1831
        %p1834 = scmp.lt.s32.totalorder %s26, 1
        %s1835 = scalar_select %p1834, %s26, 1
        %s1836 = smul.addr %s1835, 8
        %s1837 = scalar_lea.vmem %s5, %s1836
        %s1838 = sand.u32 %s170, 1
        %s1839 = scalar_lea.sflag [#allocation5], %s1838
        %s1840 = sand.u32 %s170, 1
        %s1841 = smul.addr %s1840, 128
        %s1842 = scalar_lea.vmem [#allocation8], %s1841
        // Predicated region
        $region49: #{tpu_custom_call.1} parent=39 // pred_check
          %p1843 = pneg %p154
        $region50: #{tpu_custom_call.1} parent=39 // pred_check_branch
          %1845 = sbr.rel (%p1843) target = $region52
        $region51: #{tpu_custom_call.1} parent=39 // pred_region
          _
        $region52: #{tpu_custom_call.1} parent=39 // pred_fallthru
          _
        // Predicated region
        $region53: #{tpu_custom_call.1} parent=39 // pred_check
          %p1846 = pneg %p180
        $region54: #{tpu_custom_call.1} parent=39 // pred_check_branch
          %1848 = sbr.rel (%p1846) target = $region56
        $region55: #{tpu_custom_call.1} parent=39 // pred_region
          %s1849 = smul.u32 8, %s26
          %s1851 = ssub.s32 2048, 2048
          %1852 = vsyncadd %s1839, %s1851
          %s1853 = smul.addr %s1849, 2
          %s1854 = smul.addr %s1853, 128
          %s1855 = scalar_lea.hbm %s6, %s1854
          %s1856 = sshll.u32 %s1842, 4
          %s1857 = int_to_ptr.vmem [resolvable:$true] %s1856
          %1862 = dma.vmem_to_hbm [thread:$0]  %s1857, 2048, %s1855, %s1839, 256, 256, 16
        $region56: #{tpu_custom_call.1} parent=39 // pred_fallthru
          _
      $region40: #{tpu_custom_call.1} parent=5 // pred_fallthru
        _
      %p1863 = scmp.le.s32.totalorder 2, %s21
      // Predicated region
      $region57: #{tpu_custom_call.1} parent=5 // pred_check
        %p1864 = pneg %p1863
      $region58: #{tpu_custom_call.1} parent=5 // pred_check_branch
        %1866 = sbr.rel (%p1864) target = $region60
      $region59: #{tpu_custom_call.1} parent=5 // pred_region
        %s1867 = ssub.s32 %s21, 2
        // Predicated region
        $region61: #{tpu_custom_call.1} parent=59 // pred_check
          %p1868 = pneg %p160
        $region62: #{tpu_custom_call.1} parent=59 // pred_check_branch
          %1870 = sbr.rel (%p1868) target = $region64
        $region63: #{tpu_custom_call.1} parent=59 // pred_region
          %p1871 = scmp.lt.s32.totalorder %s27, 1
          %s1872 = scalar_select %p1871, %s27, 1
          %s1873 = smul.addr %s1872, 8
          %s1874 = scalar_lea.vmem %s5, %s1873
        $region64: #{tpu_custom_call.1} parent=59 // pred_fallthru
          _
        // Predicated region
        $region65: #{tpu_custom_call.1} parent=59 // pred_check
          %p1875 = pneg %p186
        $region66: #{tpu_custom_call.1} parent=59 // pred_check_branch
          %1877 = sbr.rel (%p1875) target = $region68
        $region67: #{tpu_custom_call.1} parent=59 // pred_region
          %s1878 = sand.u32 %s171, 1
          %s1879 = scalar_lea.sflag [#allocation5], %s1878
          %s1880 = sand.u32 %s171, 1
          %s1881 = smul.addr %s1880, 128
          %s1882 = scalar_lea.vmem [#allocation8], %s1881
          %1883 = dma.done %s1879, 2048
        $region68: #{tpu_custom_call.1} parent=59 // pred_fallthru
          _
      $region60: #{tpu_custom_call.1} parent=5 // pred_fallthru
        _
    $region6: #{tpu_custom_call.1} parent=1 // loop_footer
      %s25 = sadd.s32 1, %s21
    $region7: #{tpu_custom_call.1} parent=1 // loop_footer_branch
      %20 = sbr.rel target = $region3
    $region8: #{tpu_custom_call.1} parent=1 // loop_exit
      _
    %1884 = vsyncpa [#allocation4], 1
    %s1885 = scalar_lea.sflag [#allocation4], 1
    %1886 = vsyncpa %s1885, 1
    %1887 = vsyncpa [#allocation7], 1
    %1888 = vsyncpa [#allocation5], 1
    %s1889 = scalar_lea.sflag [#allocation5], 1
    %1890 = vsyncpa %s1889, 1

</llo_original>
